<compile_context>
chip_gen: v5e
topology: v5e:2x2
jax: 0.10.0
libtpu: 0.0.40
codegen_flags: <defaults>
</compile_context>

<pallas_src>
import functools

import jax
import jax.numpy as jnp
from jax import lax
from jax.experimental import pallas as pl
from jax.experimental.pallas import tpu as pltpu


def _evolving_gconv_kernel(
    x_ref,     # (K*N, Ti*C)    all time chunks of one batch element, lane-dense
    dy0_ref,   # (N, F)         initial dynamic node features (linear_s2d output)
    wxe_ref,   # (Ti*C, 3F)     GRU input weights with the chunk-mean folded in
    bx_ref,    # (1, 3F)
    wh_ref,    # (F, 3F)        GRU hidden weights (gate order: r | z | n)
    bh_ref,    # (1, 3F)
    w12_ref,   # (F, 2F)        fused sender|receiver projection
    b12_ref,   # (1, 2F)
    wm_ref,    # (gdep+1, Ti*C, Ti*C_out)   MixProp read-out, kron(I_Ti, wm_hop)
    bm_ref,    # (1, Ti*C_out)
    out_ref,   # (K*N, Ti*C_out)
    *,
    gcn_depth: int,
    prop_alpha: float,
    num_chunks: int,
    num_nodes: int,
    hidden: int,
):
    K, N, f = num_chunks, num_nodes, hidden
    x_flat = x_ref[...].astype(jnp.float32)                  # (K*N, Ti*C)

    # ---- hoisted, loop-invariant weight / bias loads (used in the unrolled loop)
    wh = wh_ref[...]
    bh = bh_ref[...]
    w12 = w12_ref[...]
    b12 = b12_ref[...]

    # ---- Phase 1a: all K GRU input projections in ONE batched MXU op ------------
    # (chunk-mean over time is folded into wxe on the host, so this equals
    #  mean_t(x_chunk) @ wx for every chunk simultaneously)
    gx_all = jnp.dot(x_flat, wxe_ref[...],
                     preferred_element_type=jnp.float32) + bx_ref[...]   # (K*N, 3F)

    # ---- Phase 1b: sequential node-state GRU + per-chunk dynamic adjacency ------
    h_state = dy0_ref[...].astype(jnp.float32)               # (N, F)
    adjs = []
    for k in range(K):                                       # K is small & static
        gx = gx_all[k * N:(k + 1) * N]                       # (N, 3F) static slice
        gh = jnp.dot(h_state, wh, preferred_element_type=jnp.float32) + bh
        r = jax.nn.sigmoid(gx[:, 0 * f:1 * f] + gh[:, 0 * f:1 * f])
        z = jax.nn.sigmoid(gx[:, 1 * f:2 * f] + gh[:, 1 * f:2 * f])
        cand = jnp.tanh(gx[:, 2 * f:3 * f] + r * gh[:, 2 * f:3 * f])
        h_state = (1.0 - z) * cand + z * h_state             # (N, F)

        # fused sender/receiver projection, then adj = softmax(relu(S @ R^T))
        sr = jnp.tanh(jnp.dot(h_state, w12,
                              preferred_element_type=jnp.float32) + b12)  # (N, 2F)
        s, rcv = sr[:, :f], sr[:, f:]
        logits = lax.dot_general(s, rcv, (((1,), (1,)), ((), ())),
                                 preferred_element_type=jnp.float32)      # (N, N)
        logits = jax.nn.relu(logits)
        logits = logits - jnp.max(logits, axis=-1, keepdims=True)
        e = jnp.exp(logits)
        adj = e / jnp.sum(e, axis=-1, keepdims=True)         # exact denominator
        adjs.append(adj)

    # ---- Phase 2: MixProp hops + read-out, batched over all K chunks ------------
    # Read-out of the concatenated hops == sum over hops of
    # (K*N, Ti*C) @ kron(I_Ti, wm_hop); one full-width MXU op per hop.
    x_chunks = [x_flat[k * N:(k + 1) * N] for k in range(K)]
    h_chunks = list(x_chunks)
    acc = jnp.dot(x_flat, wm_ref[0], preferred_element_type=jnp.float32)
    for hop in range(gcn_depth):
        h_chunks = [
            prop_alpha * x_chunks[k]
            + (1.0 - prop_alpha) * jnp.dot(adjs[k], h_chunks[k],
                                           preferred_element_type=jnp.float32)
            for k in range(K)
        ]
        h_stack = jnp.concatenate(h_chunks, axis=0)          # (K*N, Ti*C), tile-aligned
        acc = acc + jnp.dot(h_stack, wm_ref[hop + 1],
                            preferred_element_type=jnp.float32)
    acc = acc + bm_ref[...]
    out_ref[...] = acc.astype(out_ref.dtype)


def evolving_gconv(x, st_node_fea, params, *, dy_interval, gcn_depth, prop_alpha):
    """x: [B, conv_channels, N, T] (PyTorch NCHW). Returns [B, residual_channels, N, T]."""
    B, C, N, T = x.shape
    assert T % dy_interval == 0, "wrapper requires T divisible by dy_interval"
    # TODO(synk): ragged final chunk (T % dy_interval != 0) not handled.
    K = T // dy_interval
    Ti = dy_interval
    F_dy = params["w1"].shape[0]
    C_out = params["wm"].shape[1]
    TiC = Ti * C
    TiCo = Ti * C_out

    # ---- tiny host-side (XLA) preprocessing -------------------------------------
    dy0 = jnp.dot(st_node_fea, params["w_s2d"]) + params["b_s2d"]           # (N, F_dy)
    # chunk-mean folded into the GRU input weight:  x_flat @ wx_eff == mean_t(x) @ wx
    wx_eff = jnp.tile(params["wx"], (Ti, 1)) / float(Ti)                    # (Ti*C, 3F)
    # fused sender | receiver projection
    w12 = jnp.concatenate([params["w1"], params["w2"]], axis=1)             # (F, 2F)
    b12 = jnp.concatenate([params["b1"], params["b2"]], axis=1)             # (1, 2F)
    # per-hop read-out weight lifted to the flat layout: kron(I_Ti, wm_hop)
    eye_t = jnp.eye(Ti, dtype=params["wm"].dtype)
    wm_big = jnp.stack([jnp.kron(eye_t, params["wm"][k * C:(k + 1) * C, :])
                        for k in range(gcn_depth + 1)])                     # (gdep+1, Ti*C, Ti*C_out)
    bm_big = jnp.tile(params["bm"], (1, Ti))                                # (1, Ti*C_out)

    # Lane-dense layout: [B, K*N, Ti*C] (nodes of all chunks on sublanes,
    # (time, channel) on lanes).  TODO(synk): fold this relayout (and the inverse
    # on the output) into the kernel for production shapes.
    x_r = x.reshape(B, C, N, K, Ti).transpose(0, 3, 2, 4, 1).reshape(B, K * N, TiC)

    def full_spec(a):
        nd = a.ndim
        return pl.BlockSpec(a.shape, lambda b, _nd=nd: (0,) * _nd)

    in_specs = [
        pl.BlockSpec((None, K * N, TiC), lambda b: (b, 0, 0)),
        full_spec(dy0),
        full_spec(wx_eff), full_spec(params["bx"]),
        full_spec(params["wh"]), full_spec(params["bh"]),
        full_spec(w12), full_spec(b12),
        full_spec(wm_big), full_spec(bm_big),
    ]
    out_spec = pl.BlockSpec((None, K * N, TiCo), lambda b: (b, 0, 0))

    kernel = functools.partial(
        _evolving_gconv_kernel,
        gcn_depth=gcn_depth, prop_alpha=prop_alpha,
        num_chunks=K, num_nodes=N, hidden=F_dy)

    out_r = pl.pallas_call(
        kernel,
        out_shape=jax.ShapeDtypeStruct((B, K * N, TiCo), jnp.float32),
        grid_spec=pltpu.PrefetchScalarGridSpec(
            num_scalar_prefetch=0,
            grid=(B,),
            in_specs=in_specs,
            out_specs=out_spec,
        ),
        compiler_params=pltpu.CompilerParams(
            dimension_semantics=("parallel",),      # batch sharded across TCs on v7x
            vmem_limit_bytes=32 * 1024 * 1024,
        ),
    )(x_r, dy0, wx_eff, params["bx"], params["wh"], params["bh"],
      w12, b12, wm_big, bm_big)

    # back to PyTorch layout [B, C_out, N, T]
    return out_r.reshape(B, K, N, Ti, C_out).transpose(0, 4, 2, 1, 3).reshape(B, C_out, N, T)


def evolving_gconv_reference(x, st_node_fea, params, *, dy_interval, gcn_depth, prop_alpha):
    """Pure-JAX reference with identical semantics (for correctness check)."""
    B, C, N, T = x.shape
    dy0 = jnp.dot(st_node_fea, params["w_s2d"]) + params["b_s2d"]
    F_dy = dy0.shape[-1]
    state = jnp.broadcast_to(dy0[None], (B, N, F_dy))
    outs = []
    for t0 in range(0, T, dy_interval):
        x_i = x[..., t0:min(t0 + dy_interval, T)]                           # (B, C, N, Ti)
        inp = jnp.mean(jnp.transpose(x_i, (0, 2, 1, 3)), axis=-1)           # (B, N, C)
        gx = inp @ params["wx"] + params["bx"]
        gh = state @ params["wh"] + params["bh"]
        r = jax.nn.sigmoid(gx[..., :F_dy] + gh[..., :F_dy])
        z = jax.nn.sigmoid(gx[..., F_dy:2 * F_dy] + gh[..., F_dy:2 * F_dy])
        cand = jnp.tanh(gx[..., 2 * F_dy:] + r * gh[..., 2 * F_dy:])
        state = (1.0 - z) * cand + z * state
        s = jnp.tanh(state @ params["w1"] + params["b1"])
        rcv = jnp.tanh(state @ params["w2"] + params["b2"])
        logits = jax.nn.relu(jnp.einsum("bnf,bmf->bnm", s, rcv))
        adj = jax.nn.softmax(logits, axis=-1)
        h = x_i
        hops = [h]
        for _ in range(gcn_depth):
            h = prop_alpha * x_i + (1.0 - prop_alpha) * jnp.einsum("bvw,bcwl->bcvl", adj, h)
            hops.append(h)
        ho = jnp.concatenate(hops, axis=1)                                  # (B, (gdep+1)*C, N, Ti)
        y = jnp.einsum("bcnl,co->bonl", ho, params["wm"]) \
            + params["bm"][0][None, :, None, None]
        outs.append(y)
    return jnp.concatenate(outs, axis=-1)


if __name__ == "__main__":
    # Module hyper-parameters (small, consistent with the PyTorch __init__).
    B, N, T = 2, 8, 16
    conv_channels = 32
    residual_channels = 32
    gcn_depth = 2
    st_embedding_dim = 16
    dy_embedding_dim = 16
    dy_interval = 4
    prop_alpha = 0.05

    key = jax.random.PRNGKey(0)
    keys = jax.random.split(key, 16)

    def init(k, shape, scale=0.1):
        return scale * jax.random.normal(k, shape, dtype=jnp.float32)

    F_dy = dy_embedding_dim
    params = {
        "w_s2d": init(keys[0], (st_embedding_dim, F_dy)),
        "b_s2d": init(keys[1], (F_dy,)),
        "wx": init(keys[2], (conv_channels, 3 * F_dy)),
        "bx": init(keys[3], (1, 3 * F_dy)),
        "wh": init(keys[4], (F_dy, 3 * F_dy)),
        "bh": init(keys[5], (1, 3 * F_dy)),
        "w1": init(keys[6], (F_dy, F_dy)),
        "b1": init(keys[7], (1, F_dy)),
        "w2": init(keys[8], (F_dy, F_dy)),
        "b2": init(keys[9], (1, F_dy)),
        "wm": init(keys[10], ((gcn_depth + 1) * conv_channels, residual_channels)),
        "bm": init(keys[11], (1, residual_channels)),
    }

    x = jax.random.normal(keys[12], (B, conv_channels, N, T), dtype=jnp.float32)
    st_node_fea = jax.random.normal(keys[13], (N, st_embedding_dim), dtype=jnp.float32)

    out = evolving_gconv(x, st_node_fea, params, dy_interval=dy_interval,
                         gcn_depth=gcn_depth, prop_alpha=prop_alpha)
    out = jax.block_until_ready(out)

    ref = evolving_gconv_reference(x, st_node_fea, params, dy_interval=dy_interval,
                                   gcn_depth=gcn_depth, prop_alpha=prop_alpha)

    assert out.shape == (B, residual_channels, N, T), out.shape
    max_err = float(jnp.max(jnp.abs(out - ref)))
    # Exact softmax denominator (no approx reciprocal) -> comfortably within f32
    # kernel-vs-XLA tolerance.
    assert jnp.allclose(out, ref, rtol=1e-3, atol=1e-3), f"max abs err {max_err}"
    print("KERNEL_OK")
</pallas_src>

<mosaic_0001>
module attributes {stable_mosaic.version = 11 : i64} {
  func.func @_evolving_gconv_kernel(%arg0: i32, %arg1: memref<1x32x128xf32, #tpu.memory_space<vmem>>, %arg2: memref<8x16xf32, #tpu.memory_space<vmem>>, %arg3: memref<128x48xf32, #tpu.memory_space<vmem>>, %arg4: memref<1x48xf32, #tpu.memory_space<vmem>>, %arg5: memref<16x48xf32, #tpu.memory_space<vmem>>, %arg6: memref<1x48xf32, #tpu.memory_space<vmem>>, %arg7: memref<16x32xf32, #tpu.memory_space<vmem>>, %arg8: memref<1x32xf32, #tpu.memory_space<vmem>>, %arg9: memref<3x128x128xf32, #tpu.memory_space<vmem>>, %arg10: memref<1x128xf32, #tpu.memory_space<vmem>>, %arg11: memref<1x32x128xf32, #tpu.memory_space<vmem>>) attributes {dimension_semantics = [#tpu.dimension_semantics<parallel>], iteration_bounds = array<i64: 2>, scalar_prefetch = 0 : i64, scratch_operands = 0 : i64, tpu.core_type = #tpu.core_type<tc>, window_params = [{transform_indices = @transform_0, window_bounds = array<i64: 1, 32, 128>}, {pipeline_mode = #tpu.pipeline_mode<synchronous>, transform_indices = @transform_1, window_bounds = array<i64: 8, 16>}, {pipeline_mode = #tpu.pipeline_mode<synchronous>, transform_indices = @transform_2, window_bounds = array<i64: 128, 48>}, {pipeline_mode = #tpu.pipeline_mode<synchronous>, transform_indices = @transform_3, window_bounds = array<i64: 1, 48>}, {pipeline_mode = #tpu.pipeline_mode<synchronous>, transform_indices = @transform_4, window_bounds = array<i64: 16, 48>}, {pipeline_mode = #tpu.pipeline_mode<synchronous>, transform_indices = @transform_5, window_bounds = array<i64: 1, 48>}, {pipeline_mode = #tpu.pipeline_mode<synchronous>, transform_indices = @transform_6, window_bounds = array<i64: 16, 32>}, {pipeline_mode = #tpu.pipeline_mode<synchronous>, transform_indices = @transform_7, window_bounds = array<i64: 1, 32>}, {pipeline_mode = #tpu.pipeline_mode<synchronous>, transform_indices = @transform_8, window_bounds = array<i64: 3, 128, 128>}, {pipeline_mode = #tpu.pipeline_mode<synchronous>, transform_indices = @transform_9, window_bounds = array<i64: 1, 128>}, {transform_indices = @transform_10, window_bounds = array<i64: 1, 32, 128>}]} {
    %c0 = arith.constant 0 : index
    %c0_0 = arith.constant 0 : index
    %c0_1 = arith.constant 0 : index
    %0 = vector.load %arg1[%c0, %c0_0, %c0_1] : memref<1x32x128xf32, #tpu.memory_space<vmem>>, vector<1x32x128xf32>
    %1 = vector.shape_cast %0 : vector<1x32x128xf32> to vector<32x128xf32>
    %c0_2 = arith.constant 0 : index
    %c0_3 = arith.constant 0 : index
    %2 = vector.load %arg5[%c0_2, %c0_3] : memref<16x48xf32, #tpu.memory_space<vmem>>, vector<16x48xf32>
    %c0_4 = arith.constant 0 : index
    %c0_5 = arith.constant 0 : index
    %3 = vector.load %arg6[%c0_4, %c0_5] : memref<1x48xf32, #tpu.memory_space<vmem>>, vector<1x48xf32>
    %c0_6 = arith.constant 0 : index
    %c0_7 = arith.constant 0 : index
    %4 = vector.load %arg7[%c0_6, %c0_7] : memref<16x32xf32, #tpu.memory_space<vmem>>, vector<16x32xf32>
    %c0_8 = arith.constant 0 : index
    %c0_9 = arith.constant 0 : index
    %5 = vector.load %arg8[%c0_8, %c0_9] : memref<1x32xf32, #tpu.memory_space<vmem>>, vector<1x32xf32>
    %c0_10 = arith.constant 0 : index
    %c0_11 = arith.constant 0 : index
    %6 = vector.load %arg3[%c0_10, %c0_11] : memref<128x48xf32, #tpu.memory_space<vmem>>, vector<128x48xf32>
    %cst = arith.constant dense<0.000000e+00> : vector<32x48xf32>
    %7 = tpu.matmul %1, %6, %cst {dimension_numbers = #tpu.dot_dimension_numbers<[1], [0], [0], [1], [0, 0, 1, 1], [], []>} : vector<32x128xf32>, vector<128x48xf32>, vector<32x48xf32> -> vector<32x48xf32>
    %c0_12 = arith.constant 0 : index
    %c0_13 = arith.constant 0 : index
    %8 = vector.load %arg4[%c0_12, %c0_13] : memref<1x48xf32, #tpu.memory_space<vmem>>, vector<1x48xf32>
    %9 = vector.broadcast %8 : vector<1x48xf32> to vector<32x48xf32>
    %10 = arith.addf %7, %9 : vector<32x48xf32>
    %c0_14 = arith.constant 0 : index
    %c0_15 = arith.constant 0 : index
    %11 = vector.load %arg2[%c0_14, %c0_15] : memref<8x16xf32, #tpu.memory_space<vmem>>, vector<8x16xf32>
    %12 = vector.extract_strided_slice %10 {offsets = [0, 0], sizes = [8, 48], strides = [1, 1]} : vector<32x48xf32> to vector<8x48xf32>
    %cst_16 = arith.constant dense<0.000000e+00> : vector<8x48xf32>
    %13 = tpu.matmul %11, %2, %cst_16 {dimension_numbers = #tpu.dot_dimension_numbers<[1], [0], [0], [1], [0, 0, 1, 1], [], []>} : vector<8x16xf32>, vector<16x48xf32>, vector<8x48xf32> -> vector<8x48xf32>
    %14 = vector.broadcast %3 : vector<1x48xf32> to vector<8x48xf32>
    %15 = arith.addf %13, %14 : vector<8x48xf32>
    %16 = vector.extract_strided_slice %12 {offsets = [0, 0], sizes = [8, 16], strides = [1, 1]} : vector<8x48xf32> to vector<8x16xf32>
    %17 = vector.extract_strided_slice %15 {offsets = [0, 0], sizes = [8, 16], strides = [1, 1]} : vector<8x48xf32> to vector<8x16xf32>
    %18 = arith.addf %16, %17 : vector<8x16xf32>
    %19 = arith.negf %18 : vector<8x16xf32>
    %20 = math.exp %19 : vector<8x16xf32>
    %cst_17 = arith.constant 1.000000e+00 : f32
    %21 = vector.broadcast %cst_17 : f32 to vector<8x16xf32>
    %22 = arith.addf %21, %20 : vector<8x16xf32>
    %23 = arith.divf %21, %22 : vector<8x16xf32>
    %24 = vector.extract_strided_slice %12 {offsets = [0, 16], sizes = [8, 16], strides = [1, 1]} : vector<8x48xf32> to vector<8x16xf32>
    %25 = vector.extract_strided_slice %15 {offsets = [0, 16], sizes = [8, 16], strides = [1, 1]} : vector<8x48xf32> to vector<8x16xf32>
    %26 = arith.addf %24, %25 : vector<8x16xf32>
    %27 = arith.negf %26 : vector<8x16xf32>
    %28 = math.exp %27 : vector<8x16xf32>
    %cst_18 = arith.constant 1.000000e+00 : f32
    %29 = vector.broadcast %cst_18 : f32 to vector<8x16xf32>
    %30 = arith.addf %29, %28 : vector<8x16xf32>
    %31 = arith.divf %29, %30 : vector<8x16xf32>
    %32 = vector.extract_strided_slice %12 {offsets = [0, 32], sizes = [8, 16], strides = [1, 1]} : vector<8x48xf32> to vector<8x16xf32>
    %33 = vector.extract_strided_slice %15 {offsets = [0, 32], sizes = [8, 16], strides = [1, 1]} : vector<8x48xf32> to vector<8x16xf32>
    %34 = arith.mulf %23, %33 : vector<8x16xf32>
    %35 = arith.addf %32, %34 : vector<8x16xf32>
    %36 = math.tanh %35 : vector<8x16xf32>
    %cst_19 = arith.constant 1.000000e+00 : f32
    %37 = vector.broadcast %cst_19 : f32 to vector<8x16xf32>
    %38 = arith.subf %37, %31 : vector<8x16xf32>
    %39 = arith.mulf %38, %36 : vector<8x16xf32>
    %40 = arith.mulf %31, %11 : vector<8x16xf32>
    %41 = arith.addf %39, %40 : vector<8x16xf32>
    %cst_20 = arith.constant dense<0.000000e+00> : vector<8x32xf32>
    %42 = tpu.matmul %41, %4, %cst_20 {dimension_numbers = #tpu.dot_dimension_numbers<[1], [0], [0], [1], [0, 0, 1, 1], [], []>} : vector<8x16xf32>, vector<16x32xf32>, vector<8x32xf32> -> vector<8x32xf32>
    %43 = vector.broadcast %5 : vector<1x32xf32> to vector<8x32xf32>
    %44 = arith.addf %42, %43 : vector<8x32xf32>
    %45 = math.tanh %44 : vector<8x32xf32>
    %46 = vector.extract_strided_slice %45 {offsets = [0, 0], sizes = [8, 16], strides = [1, 1]} : vector<8x32xf32> to vector<8x16xf32>
    %47 = vector.extract_strided_slice %45 {offsets = [0, 16], sizes = [8, 16], strides = [1, 1]} : vector<8x32xf32> to vector<8x16xf32>
    %cst_21 = arith.constant dense<0.000000e+00> : vector<8x8xf32>
    %48 = tpu.matmul %46, %47, %cst_21 {dimension_numbers = #tpu.dot_dimension_numbers<[1], [1], [0], [0], [0, 0, 1, 0], [], []>} : vector<8x16xf32>, vector<8x16xf32>, vector<8x8xf32> -> vector<8x8xf32>
    %cst_22 = arith.constant 0.000000e+00 : f32
    %49 = vector.broadcast %cst_22 : f32 to vector<8x8xf32>
    %50 = arith.maximumf %48, %49 : vector<8x8xf32>
    %cst_23 = arith.constant dense<0xFF800000> : vector<8xf32>
    %51 = vector.multi_reduction <maximumf>, %50, %cst_23 [1] : vector<8x8xf32> to vector<8xf32>
    %52 = vector.shape_cast %51 : vector<8xf32> to vector<8x1xf32>
    %53 = vector.broadcast %52 : vector<8x1xf32> to vector<8x8xf32>
    %54 = arith.subf %50, %53 : vector<8x8xf32>
    %55 = math.exp %54 : vector<8x8xf32>
    %cst_24 = arith.constant dense<0.000000e+00> : vector<8xf32>
    %56 = vector.multi_reduction <add>, %55, %cst_24 [1] : vector<8x8xf32> to vector<8xf32>
    %57 = vector.shape_cast %56 : vector<8xf32> to vector<8x1xf32>
    %58 = vector.broadcast %57 : vector<8x1xf32> to vector<8x8xf32>
    %59 = arith.divf %55, %58 : vector<8x8xf32>
    %60 = vector.extract_strided_slice %10 {offsets = [8, 0], sizes = [8, 48], strides = [1, 1]} : vector<32x48xf32> to vector<8x48xf32>
    %cst_25 = arith.constant dense<0.000000e+00> : vector<8x48xf32>
    %61 = tpu.matmul %41, %2, %cst_25 {dimension_numbers = #tpu.dot_dimension_numbers<[1], [0], [0], [1], [0, 0, 1, 1], [], []>} : vector<8x16xf32>, vector<16x48xf32>, vector<8x48xf32> -> vector<8x48xf32>
    %62 = vector.broadcast %3 : vector<1x48xf32> to vector<8x48xf32>
    %63 = arith.addf %61, %62 : vector<8x48xf32>
    %64 = vector.extract_strided_slice %60 {offsets = [0, 0], sizes = [8, 16], strides = [1, 1]} : vector<8x48xf32> to vector<8x16xf32>
    %65 = vector.extract_strided_slice %63 {offsets = [0, 0], sizes = [8, 16], strides = [1, 1]} : vector<8x48xf32> to vector<8x16xf32>
    %66 = arith.addf %64, %65 : vector<8x16xf32>
    %67 = arith.negf %66 : vector<8x16xf32>
    %68 = math.exp %67 : vector<8x16xf32>
    %cst_26 = arith.constant 1.000000e+00 : f32
    %69 = vector.broadcast %cst_26 : f32 to vector<8x16xf32>
    %70 = arith.addf %69, %68 : vector<8x16xf32>
    %71 = arith.divf %69, %70 : vector<8x16xf32>
    %72 = vector.extract_strided_slice %60 {offsets = [0, 16], sizes = [8, 16], strides = [1, 1]} : vector<8x48xf32> to vector<8x16xf32>
    %73 = vector.extract_strided_slice %63 {offsets = [0, 16], sizes = [8, 16], strides = [1, 1]} : vector<8x48xf32> to vector<8x16xf32>
    %74 = arith.addf %72, %73 : vector<8x16xf32>
    %75 = arith.negf %74 : vector<8x16xf32>
    %76 = math.exp %75 : vector<8x16xf32>
    %cst_27 = arith.constant 1.000000e+00 : f32
    %77 = vector.broadcast %cst_27 : f32 to vector<8x16xf32>
    %78 = arith.addf %77, %76 : vector<8x16xf32>
    %79 = arith.divf %77, %78 : vector<8x16xf32>
    %80 = vector.extract_strided_slice %60 {offsets = [0, 32], sizes = [8, 16], strides = [1, 1]} : vector<8x48xf32> to vector<8x16xf32>
    %81 = vector.extract_strided_slice %63 {offsets = [0, 32], sizes = [8, 16], strides = [1, 1]} : vector<8x48xf32> to vector<8x16xf32>
    %82 = arith.mulf %71, %81 : vector<8x16xf32>
    %83 = arith.addf %80, %82 : vector<8x16xf32>
    %84 = math.tanh %83 : vector<8x16xf32>
    %cst_28 = arith.constant 1.000000e+00 : f32
    %85 = vector.broadcast %cst_28 : f32 to vector<8x16xf32>
    %86 = arith.subf %85, %79 : vector<8x16xf32>
    %87 = arith.mulf %86, %84 : vector<8x16xf32>
    %88 = arith.mulf %79, %41 : vector<8x16xf32>
    %89 = arith.addf %87, %88 : vector<8x16xf32>
    %cst_29 = arith.constant dense<0.000000e+00> : vector<8x32xf32>
    %90 = tpu.matmul %89, %4, %cst_29 {dimension_numbers = #tpu.dot_dimension_numbers<[1], [0], [0], [1], [0, 0, 1, 1], [], []>} : vector<8x16xf32>, vector<16x32xf32>, vector<8x32xf32> -> vector<8x32xf32>
    %91 = vector.broadcast %5 : vector<1x32xf32> to vector<8x32xf32>
    %92 = arith.addf %90, %91 : vector<8x32xf32>
    %93 = math.tanh %92 : vector<8x32xf32>
    %94 = vector.extract_strided_slice %93 {offsets = [0, 0], sizes = [8, 16], strides = [1, 1]} : vector<8x32xf32> to vector<8x16xf32>
    %95 = vector.extract_strided_slice %93 {offsets = [0, 16], sizes = [8, 16], strides = [1, 1]} : vector<8x32xf32> to vector<8x16xf32>
    %cst_30 = arith.constant dense<0.000000e+00> : vector<8x8xf32>
    %96 = tpu.matmul %94, %95, %cst_30 {dimension_numbers = #tpu.dot_dimension_numbers<[1], [1], [0], [0], [0, 0, 1, 0], [], []>} : vector<8x16xf32>, vector<8x16xf32>, vector<8x8xf32> -> vector<8x8xf32>
    %cst_31 = arith.constant 0.000000e+00 : f32
    %97 = vector.broadcast %cst_31 : f32 to vector<8x8xf32>
    %98 = arith.maximumf %96, %97 : vector<8x8xf32>
    %cst_32 = arith.constant dense<0xFF800000> : vector<8xf32>
    %99 = vector.multi_reduction <maximumf>, %98, %cst_32 [1] : vector<8x8xf32> to vector<8xf32>
    %100 = vector.shape_cast %99 : vector<8xf32> to vector<8x1xf32>
    %101 = vector.broadcast %100 : vector<8x1xf32> to vector<8x8xf32>
    %102 = arith.subf %98, %101 : vector<8x8xf32>
    %103 = math.exp %102 : vector<8x8xf32>
    %cst_33 = arith.constant dense<0.000000e+00> : vector<8xf32>
    %104 = vector.multi_reduction <add>, %103, %cst_33 [1] : vector<8x8xf32> to vector<8xf32>
    %105 = vector.shape_cast %104 : vector<8xf32> to vector<8x1xf32>
    %106 = vector.broadcast %105 : vector<8x1xf32> to vector<8x8xf32>
    %107 = arith.divf %103, %106 : vector<8x8xf32>
    %108 = vector.extract_strided_slice %10 {offsets = [16, 0], sizes = [8, 48], strides = [1, 1]} : vector<32x48xf32> to vector<8x48xf32>
    %cst_34 = arith.constant dense<0.000000e+00> : vector<8x48xf32>
    %109 = tpu.matmul %89, %2, %cst_34 {dimension_numbers = #tpu.dot_dimension_numbers<[1], [0], [0], [1], [0, 0, 1, 1], [], []>} : vector<8x16xf32>, vector<16x48xf32>, vector<8x48xf32> -> vector<8x48xf32>
    %110 = vector.broadcast %3 : vector<1x48xf32> to vector<8x48xf32>
    %111 = arith.addf %109, %110 : vector<8x48xf32>
    %112 = vector.extract_strided_slice %108 {offsets = [0, 0], sizes = [8, 16], strides = [1, 1]} : vector<8x48xf32> to vector<8x16xf32>
    %113 = vector.extract_strided_slice %111 {offsets = [0, 0], sizes = [8, 16], strides = [1, 1]} : vector<8x48xf32> to vector<8x16xf32>
    %114 = arith.addf %112, %113 : vector<8x16xf32>
    %115 = arith.negf %114 : vector<8x16xf32>
    %116 = math.exp %115 : vector<8x16xf32>
    %cst_35 = arith.constant 1.000000e+00 : f32
    %117 = vector.broadcast %cst_35 : f32 to vector<8x16xf32>
    %118 = arith.addf %117, %116 : vector<8x16xf32>
    %119 = arith.divf %117, %118 : vector<8x16xf32>
    %120 = vector.extract_strided_slice %108 {offsets = [0, 16], sizes = [8, 16], strides = [1, 1]} : vector<8x48xf32> to vector<8x16xf32>
    %121 = vector.extract_strided_slice %111 {offsets = [0, 16], sizes = [8, 16], strides = [1, 1]} : vector<8x48xf32> to vector<8x16xf32>
    %122 = arith.addf %120, %121 : vector<8x16xf32>
    %123 = arith.negf %122 : vector<8x16xf32>
    %124 = math.exp %123 : vector<8x16xf32>
    %cst_36 = arith.constant 1.000000e+00 : f32
    %125 = vector.broadcast %cst_36 : f32 to vector<8x16xf32>
    %126 = arith.addf %125, %124 : vector<8x16xf32>
    %127 = arith.divf %125, %126 : vector<8x16xf32>
    %128 = vector.extract_strided_slice %108 {offsets = [0, 32], sizes = [8, 16], strides = [1, 1]} : vector<8x48xf32> to vector<8x16xf32>
    %129 = vector.extract_strided_slice %111 {offsets = [0, 32], sizes = [8, 16], strides = [1, 1]} : vector<8x48xf32> to vector<8x16xf32>
    %130 = arith.mulf %119, %129 : vector<8x16xf32>
    %131 = arith.addf %128, %130 : vector<8x16xf32>
    %132 = math.tanh %131 : vector<8x16xf32>
    %cst_37 = arith.constant 1.000000e+00 : f32
    %133 = vector.broadcast %cst_37 : f32 to vector<8x16xf32>
    %134 = arith.subf %133, %127 : vector<8x16xf32>
    %135 = arith.mulf %134, %132 : vector<8x16xf32>
    %136 = arith.mulf %127, %89 : vector<8x16xf32>
    %137 = arith.addf %135, %136 : vector<8x16xf32>
    %cst_38 = arith.constant dense<0.000000e+00> : vector<8x32xf32>
    %138 = tpu.matmul %137, %4, %cst_38 {dimension_numbers = #tpu.dot_dimension_numbers<[1], [0], [0], [1], [0, 0, 1, 1], [], []>} : vector<8x16xf32>, vector<16x32xf32>, vector<8x32xf32> -> vector<8x32xf32>
    %139 = vector.broadcast %5 : vector<1x32xf32> to vector<8x32xf32>
    %140 = arith.addf %138, %139 : vector<8x32xf32>
    %141 = math.tanh %140 : vector<8x32xf32>
    %142 = vector.extract_strided_slice %141 {offsets = [0, 0], sizes = [8, 16], strides = [1, 1]} : vector<8x32xf32> to vector<8x16xf32>
    %143 = vector.extract_strided_slice %141 {offsets = [0, 16], sizes = [8, 16], strides = [1, 1]} : vector<8x32xf32> to vector<8x16xf32>
    %cst_39 = arith.constant dense<0.000000e+00> : vector<8x8xf32>
    %144 = tpu.matmul %142, %143, %cst_39 {dimension_numbers = #tpu.dot_dimension_numbers<[1], [1], [0], [0], [0, 0, 1, 0], [], []>} : vector<8x16xf32>, vector<8x16xf32>, vector<8x8xf32> -> vector<8x8xf32>
    %cst_40 = arith.constant 0.000000e+00 : f32
    %145 = vector.broadcast %cst_40 : f32 to vector<8x8xf32>
    %146 = arith.maximumf %144, %145 : vector<8x8xf32>
    %cst_41 = arith.constant dense<0xFF800000> : vector<8xf32>
    %147 = vector.multi_reduction <maximumf>, %146, %cst_41 [1] : vector<8x8xf32> to vector<8xf32>
    %148 = vector.shape_cast %147 : vector<8xf32> to vector<8x1xf32>
    %149 = vector.broadcast %148 : vector<8x1xf32> to vector<8x8xf32>
    %150 = arith.subf %146, %149 : vector<8x8xf32>
    %151 = math.exp %150 : vector<8x8xf32>
    %cst_42 = arith.constant dense<0.000000e+00> : vector<8xf32>
    %152 = vector.multi_reduction <add>, %151, %cst_42 [1] : vector<8x8xf32> to vector<8xf32>
    %153 = vector.shape_cast %152 : vector<8xf32> to vector<8x1xf32>
    %154 = vector.broadcast %153 : vector<8x1xf32> to vector<8x8xf32>
    %155 = arith.divf %151, %154 : vector<8x8xf32>
    %156 = vector.extract_strided_slice %10 {offsets = [24, 0], sizes = [8, 48], strides = [1, 1]} : vector<32x48xf32> to vector<8x48xf32>
    %cst_43 = arith.constant dense<0.000000e+00> : vector<8x48xf32>
    %157 = tpu.matmul %137, %2, %cst_43 {dimension_numbers = #tpu.dot_dimension_numbers<[1], [0], [0], [1], [0, 0, 1, 1], [], []>} : vector<8x16xf32>, vector<16x48xf32>, vector<8x48xf32> -> vector<8x48xf32>
    %158 = vector.broadcast %3 : vector<1x48xf32> to vector<8x48xf32>
    %159 = arith.addf %157, %158 : vector<8x48xf32>
    %160 = vector.extract_strided_slice %156 {offsets = [0, 0], sizes = [8, 16], strides = [1, 1]} : vector<8x48xf32> to vector<8x16xf32>
    %161 = vector.extract_strided_slice %159 {offsets = [0, 0], sizes = [8, 16], strides = [1, 1]} : vector<8x48xf32> to vector<8x16xf32>
    %162 = arith.addf %160, %161 : vector<8x16xf32>
    %163 = arith.negf %162 : vector<8x16xf32>
    %164 = math.exp %163 : vector<8x16xf32>
    %cst_44 = arith.constant 1.000000e+00 : f32
    %165 = vector.broadcast %cst_44 : f32 to vector<8x16xf32>
    %166 = arith.addf %165, %164 : vector<8x16xf32>
    %167 = arith.divf %165, %166 : vector<8x16xf32>
    %168 = vector.extract_strided_slice %156 {offsets = [0, 16], sizes = [8, 16], strides = [1, 1]} : vector<8x48xf32> to vector<8x16xf32>
    %169 = vector.extract_strided_slice %159 {offsets = [0, 16], sizes = [8, 16], strides = [1, 1]} : vector<8x48xf32> to vector<8x16xf32>
    %170 = arith.addf %168, %169 : vector<8x16xf32>
    %171 = arith.negf %170 : vector<8x16xf32>
    %172 = math.exp %171 : vector<8x16xf32>
    %cst_45 = arith.constant 1.000000e+00 : f32
    %173 = vector.broadcast %cst_45 : f32 to vector<8x16xf32>
    %174 = arith.addf %173, %172 : vector<8x16xf32>
    %175 = arith.divf %173, %174 : vector<8x16xf32>
    %176 = vector.extract_strided_slice %156 {offsets = [0, 32], sizes = [8, 16], strides = [1, 1]} : vector<8x48xf32> to vector<8x16xf32>
    %177 = vector.extract_strided_slice %159 {offsets = [0, 32], sizes = [8, 16], strides = [1, 1]} : vector<8x48xf32> to vector<8x16xf32>
    %178 = arith.mulf %167, %177 : vector<8x16xf32>
    %179 = arith.addf %176, %178 : vector<8x16xf32>
    %180 = math.tanh %179 : vector<8x16xf32>
    %cst_46 = arith.constant 1.000000e+00 : f32
    %181 = vector.broadcast %cst_46 : f32 to vector<8x16xf32>
    %182 = arith.subf %181, %175 : vector<8x16xf32>
    %183 = arith.mulf %182, %180 : vector<8x16xf32>
    %184 = arith.mulf %175, %137 : vector<8x16xf32>
    %185 = arith.addf %183, %184 : vector<8x16xf32>
    %cst_47 = arith.constant dense<0.000000e+00> : vector<8x32xf32>
    %186 = tpu.matmul %185, %4, %cst_47 {dimension_numbers = #tpu.dot_dimension_numbers<[1], [0], [0], [1], [0, 0, 1, 1], [], []>} : vector<8x16xf32>, vector<16x32xf32>, vector<8x32xf32> -> vector<8x32xf32>
    %187 = vector.broadcast %5 : vector<1x32xf32> to vector<8x32xf32>
    %188 = arith.addf %186, %187 : vector<8x32xf32>
    %189 = math.tanh %188 : vector<8x32xf32>
    %190 = vector.extract_strided_slice %189 {offsets = [0, 0], sizes = [8, 16], strides = [1, 1]} : vector<8x32xf32> to vector<8x16xf32>
    %191 = vector.extract_strided_slice %189 {offsets = [0, 16], sizes = [8, 16], strides = [1, 1]} : vector<8x32xf32> to vector<8x16xf32>
    %cst_48 = arith.constant dense<0.000000e+00> : vector<8x8xf32>
    %192 = tpu.matmul %190, %191, %cst_48 {dimension_numbers = #tpu.dot_dimension_numbers<[1], [1], [0], [0], [0, 0, 1, 0], [], []>} : vector<8x16xf32>, vector<8x16xf32>, vector<8x8xf32> -> vector<8x8xf32>
    %cst_49 = arith.constant 0.000000e+00 : f32
    %193 = vector.broadcast %cst_49 : f32 to vector<8x8xf32>
    %194 = arith.maximumf %192, %193 : vector<8x8xf32>
    %cst_50 = arith.constant dense<0xFF800000> : vector<8xf32>
    %195 = vector.multi_reduction <maximumf>, %194, %cst_50 [1] : vector<8x8xf32> to vector<8xf32>
    %196 = vector.shape_cast %195 : vector<8xf32> to vector<8x1xf32>
    %197 = vector.broadcast %196 : vector<8x1xf32> to vector<8x8xf32>
    %198 = arith.subf %194, %197 : vector<8x8xf32>
    %199 = math.exp %198 : vector<8x8xf32>
    %cst_51 = arith.constant dense<0.000000e+00> : vector<8xf32>
    %200 = vector.multi_reduction <add>, %199, %cst_51 [1] : vector<8x8xf32> to vector<8xf32>
    %201 = vector.shape_cast %200 : vector<8xf32> to vector<8x1xf32>
    %202 = vector.broadcast %201 : vector<8x1xf32> to vector<8x8xf32>
    %203 = arith.divf %199, %202 : vector<8x8xf32>
    %204 = vector.extract_strided_slice %1 {offsets = [0, 0], sizes = [8, 128], strides = [1, 1]} : vector<32x128xf32> to vector<8x128xf32>
    %205 = vector.extract_strided_slice %1 {offsets = [8, 0], sizes = [8, 128], strides = [1, 1]} : vector<32x128xf32> to vector<8x128xf32>
    %206 = vector.extract_strided_slice %1 {offsets = [16, 0], sizes = [8, 128], strides = [1, 1]} : vector<32x128xf32> to vector<8x128xf32>
    %207 = vector.extract_strided_slice %1 {offsets = [24, 0], sizes = [8, 128], strides = [1, 1]} : vector<32x128xf32> to vector<8x128xf32>
    %c0_52 = arith.constant 0 : index
    %c0_53 = arith.constant 0 : index
    %c0_54 = arith.constant 0 : index
    %208 = vector.load %arg9[%c0_52, %c0_53, %c0_54] : memref<3x128x128xf32, #tpu.memory_space<vmem>>, vector<1x128x128xf32>
    %209 = vector.shape_cast %208 : vector<1x128x128xf32> to vector<128x128xf32>
    %cst_55 = arith.constant dense<0.000000e+00> : vector<32x128xf32>
    %210 = tpu.matmul %1, %209, %cst_55 {dimension_numbers = #tpu.dot_dimension_numbers<[1], [0], [0], [1], [0, 0, 1, 1], [], []>} : vector<32x128xf32>, vector<128x128xf32>, vector<32x128xf32> -> vector<32x128xf32>
    %cst_56 = arith.constant 5.000000e-02 : f32
    %211 = vector.broadcast %cst_56 : f32 to vector<8x128xf32>
    %212 = arith.mulf %211, %204 : vector<8x128xf32>
    %cst_57 = arith.constant dense<0.000000e+00> : vector<8x128xf32>
    %213 = tpu.matmul %59, %204, %cst_57 {dimension_numbers = #tpu.dot_dimension_numbers<[1], [0], [0], [1], [0, 0, 1, 1], [], []>} : vector<8x8xf32>, vector<8x128xf32>, vector<8x128xf32> -> vector<8x128xf32>
    %cst_58 = arith.constant 0.949999988 : f32
    %214 = vector.broadcast %cst_58 : f32 to vector<8x128xf32>
    %215 = arith.mulf %214, %213 : vector<8x128xf32>
    %216 = arith.addf %212, %215 : vector<8x128xf32>
    %cst_59 = arith.constant 5.000000e-02 : f32
    %217 = vector.broadcast %cst_59 : f32 to vector<8x128xf32>
    %218 = arith.mulf %217, %205 : vector<8x128xf32>
    %cst_60 = arith.constant dense<0.000000e+00> : vector<8x128xf32>
    %219 = tpu.matmul %107, %205, %cst_60 {dimension_numbers = #tpu.dot_dimension_numbers<[1], [0], [0], [1], [0, 0, 1, 1], [], []>} : vector<8x8xf32>, vector<8x128xf32>, vector<8x128xf32> -> vector<8x128xf32>
    %cst_61 = arith.constant 0.949999988 : f32
    %220 = vector.broadcast %cst_61 : f32 to vector<8x128xf32>
    %221 = arith.mulf %220, %219 : vector<8x128xf32>
    %222 = arith.addf %218, %221 : vector<8x128xf32>
    %cst_62 = arith.constant 5.000000e-02 : f32
    %223 = vector.broadcast %cst_62 : f32 to vector<8x128xf32>
    %224 = arith.mulf %223, %206 : vector<8x128xf32>
    %cst_63 = arith.constant dense<0.000000e+00> : vector<8x128xf32>
    %225 = tpu.matmul %155, %206, %cst_63 {dimension_numbers = #tpu.dot_dimension_numbers<[1], [0], [0], [1], [0, 0, 1, 1], [], []>} : vector<8x8xf32>, vector<8x128xf32>, vector<8x128xf32> -> vector<8x128xf32>
    %cst_64 = arith.constant 0.949999988 : f32
    %226 = vector.broadcast %cst_64 : f32 to vector<8x128xf32>
    %227 = arith.mulf %226, %225 : vector<8x128xf32>
    %228 = arith.addf %224, %227 : vector<8x128xf32>
    %cst_65 = arith.constant 5.000000e-02 : f32
    %229 = vector.broadcast %cst_65 : f32 to vector<8x128xf32>
    %230 = arith.mulf %229, %207 : vector<8x128xf32>
    %cst_66 = arith.constant dense<0.000000e+00> : vector<8x128xf32>
    %231 = tpu.matmul %203, %207, %cst_66 {dimension_numbers = #tpu.dot_dimension_numbers<[1], [0], [0], [1], [0, 0, 1, 1], [], []>} : vector<8x8xf32>, vector<8x128xf32>, vector<8x128xf32> -> vector<8x128xf32>
    %cst_67 = arith.constant 0.949999988 : f32
    %232 = vector.broadcast %cst_67 : f32 to vector<8x128xf32>
    %233 = arith.mulf %232, %231 : vector<8x128xf32>
    %234 = arith.addf %230, %233 : vector<8x128xf32>
    %235 = tpu.concatenate %216, %222, %228, %234 in 0 : vector<8x128xf32>, vector<8x128xf32>, vector<8x128xf32>, vector<8x128xf32> -> vector<32x128xf32>
    %c1 = arith.constant 1 : index
    %c0_68 = arith.constant 0 : index
    %c0_69 = arith.constant 0 : index
    %236 = vector.load %arg9[%c1, %c0_68, %c0_69] : memref<3x128x128xf32, #tpu.memory_space<vmem>>, vector<1x128x128xf32>
    %237 = vector.shape_cast %236 : vector<1x128x128xf32> to vector<128x128xf32>
    %cst_70 = arith.constant dense<0.000000e+00> : vector<32x128xf32>
    %238 = tpu.matmul %235, %237, %cst_70 {dimension_numbers = #tpu.dot_dimension_numbers<[1], [0], [0], [1], [0, 0, 1, 1], [], []>} : vector<32x128xf32>, vector<128x128xf32>, vector<32x128xf32> -> vector<32x128xf32>
    %239 = arith.addf %210, %238 : vector<32x128xf32>
    %cst_71 = arith.constant 5.000000e-02 : f32
    %240 = vector.broadcast %cst_71 : f32 to vector<8x128xf32>
    %241 = arith.mulf %240, %204 : vector<8x128xf32>
    %cst_72 = arith.constant dense<0.000000e+00> : vector<8x128xf32>
    %242 = tpu.matmul %59, %216, %cst_72 {dimension_numbers = #tpu.dot_dimension_numbers<[1], [0], [0], [1], [0, 0, 1, 1], [], []>} : vector<8x8xf32>, vector<8x128xf32>, vector<8x128xf32> -> vector<8x128xf32>
    %cst_73 = arith.constant 0.949999988 : f32
    %243 = vector.broadcast %cst_73 : f32 to vector<8x128xf32>
    %244 = arith.mulf %243, %242 : vector<8x128xf32>
    %245 = arith.addf %241, %244 : vector<8x128xf32>
    %cst_74 = arith.constant 5.000000e-02 : f32
    %246 = vector.broadcast %cst_74 : f32 to vector<8x128xf32>
    %247 = arith.mulf %246, %205 : vector<8x128xf32>
    %cst_75 = arith.constant dense<0.000000e+00> : vector<8x128xf32>
    %248 = tpu.matmul %107, %222, %cst_75 {dimension_numbers = #tpu.dot_dimension_numbers<[1], [0], [0], [1], [0, 0, 1, 1], [], []>} : vector<8x8xf32>, vector<8x128xf32>, vector<8x128xf32> -> vector<8x128xf32>
    %cst_76 = arith.constant 0.949999988 : f32
    %249 = vector.broadcast %cst_76 : f32 to vector<8x128xf32>
    %250 = arith.mulf %249, %248 : vector<8x128xf32>
    %251 = arith.addf %247, %250 : vector<8x128xf32>
    %cst_77 = arith.constant 5.000000e-02 : f32
    %252 = vector.broadcast %cst_77 : f32 to vector<8x128xf32>
    %253 = arith.mulf %252, %206 : vector<8x128xf32>
    %cst_78 = arith.constant dense<0.000000e+00> : vector<8x128xf32>
    %254 = tpu.matmul %155, %228, %cst_78 {dimension_numbers = #tpu.dot_dimension_numbers<[1], [0], [0], [1], [0, 0, 1, 1], [], []>} : vector<8x8xf32>, vector<8x128xf32>, vector<8x128xf32> -> vector<8x128xf32>
    %cst_79 = arith.constant 0.949999988 : f32
    %255 = vector.broadcast %cst_79 : f32 to vector<8x128xf32>
    %256 = arith.mulf %255, %254 : vector<8x128xf32>
    %257 = arith.addf %253, %256 : vector<8x128xf32>
    %cst_80 = arith.constant 5.000000e-02 : f32
    %258 = vector.broadcast %cst_80 : f32 to vector<8x128xf32>
    %259 = arith.mulf %258, %207 : vector<8x128xf32>
    %cst_81 = arith.constant dense<0.000000e+00> : vector<8x128xf32>
    %260 = tpu.matmul %203, %234, %cst_81 {dimension_numbers = #tpu.dot_dimension_numbers<[1], [0], [0], [1], [0, 0, 1, 1], [], []>} : vector<8x8xf32>, vector<8x128xf32>, vector<8x128xf32> -> vector<8x128xf32>
    %cst_82 = arith.constant 0.949999988 : f32
    %261 = vector.broadcast %cst_82 : f32 to vector<8x128xf32>
    %262 = arith.mulf %261, %260 : vector<8x128xf32>
    %263 = arith.addf %259, %262 : vector<8x128xf32>
    %264 = tpu.concatenate %245, %251, %257, %263 in 0 : vector<8x128xf32>, vector<8x128xf32>, vector<8x128xf32>, vector<8x128xf32> -> vector<32x128xf32>
    %c2 = arith.constant 2 : index
    %c0_83 = arith.constant 0 : index
    %c0_84 = arith.constant 0 : index
    %265 = vector.load %arg9[%c2, %c0_83, %c0_84] : memref<3x128x128xf32, #tpu.memory_space<vmem>>, vector<1x128x128xf32>
    %266 = vector.shape_cast %265 : vector<1x128x128xf32> to vector<128x128xf32>
    %cst_85 = arith.constant dense<0.000000e+00> : vector<32x128xf32>
    %267 = tpu.matmul %264, %266, %cst_85 {dimension_numbers = #tpu.dot_dimension_numbers<[1], [0], [0], [1], [0, 0, 1, 1], [], []>} : vector<32x128xf32>, vector<128x128xf32>, vector<32x128xf32> -> vector<32x128xf32>
    %268 = arith.addf %239, %267 : vector<32x128xf32>
    %c0_86 = arith.constant 0 : index
    %c0_87 = arith.constant 0 : index
    %269 = vector.load %arg10[%c0_86, %c0_87] : memref<1x128xf32, #tpu.memory_space<vmem>>, vector<1x128xf32>
    %270 = vector.broadcast %269 : vector<1x128xf32> to vector<32x128xf32>
    %271 = arith.addf %268, %270 : vector<32x128xf32>
    %c0_88 = arith.constant 0 : index
    %c0_89 = arith.constant 0 : index
    %c0_90 = arith.constant 0 : index
    %272 = vector.load %arg11[%c0_88, %c0_89, %c0_90] : memref<1x32x128xf32, #tpu.memory_space<vmem>>, vector<1x32x128xf32>
    %273 = vector.shape_cast %272 : vector<1x32x128xf32> to vector<32x128xf32>
    %274 = vector.shape_cast %271 : vector<32x128xf32> to vector<1x32x128xf32>
    tpu.vector_store %arg11[%c0_88, %c0_89, %c0_90], %274 {strides = array<i32>} : memref<1x32x128xf32, #tpu.memory_space<vmem>>, vector<1x32x128xf32>,
    return
  }
  func.func @transform_0(%arg0: i32) -> (i32, i32, i32) {
    %c0_i32 = arith.constant 0 : i32
    %c0_i32_0 = arith.constant 0 : i32
    %c0_i32_1 = arith.constant 0 : i32
    return %arg0, %c0_i32, %c0_i32_0 : i32, i32, i32
  }
  func.func @transform_1(%arg0: i32) -> (i32, i32) {
    %c0_i32 = arith.constant 0 : i32
    %c0_i32_0 = arith.constant 0 : i32
    %c0_i32_1 = arith.constant 0 : i32
    return %c0_i32, %c0_i32_0 : i32, i32
  }
  func.func @transform_2(%arg0: i32) -> (i32, i32) {
    %c0_i32 = arith.constant 0 : i32
    %c0_i32_0 = arith.constant 0 : i32
    %c0_i32_1 = arith.constant 0 : i32
    return %c0_i32, %c0_i32_0 : i32, i32
  }
  func.func @transform_3(%arg0: i32) -> (i32, i32) {
    %c0_i32 = arith.constant 0 : i32
    %c0_i32_0 = arith.constant 0 : i32
    %c0_i32_1 = arith.constant 0 : i32
    return %c0_i32, %c0_i32_0 : i32, i32
  }
  func.func @transform_4(%arg0: i32) -> (i32, i32) {
    %c0_i32 = arith.constant 0 : i32
    %c0_i32_0 = arith.constant 0 : i32
    %c0_i32_1 = arith.constant 0 : i32
    return %c0_i32, %c0_i32_0 : i32, i32
  }
  func.func @transform_5(%arg0: i32) -> (i32, i32) {
    %c0_i32 = arith.constant 0 : i32
    %c0_i32_0 = arith.constant 0 : i32
    %c0_i32_1 = arith.constant 0 : i32
    return %c0_i32, %c0_i32_0 : i32, i32
  }
  func.func @transform_6(%arg0: i32) -> (i32, i32) {
    %c0_i32 = arith.constant 0 : i32
    %c0_i32_0 = arith.constant 0 : i32
    %c0_i32_1 = arith.constant 0 : i32
    return %c0_i32, %c0_i32_0 : i32, i32
  }
  func.func @transform_7(%arg0: i32) -> (i32, i32) {
    %c0_i32 = arith.constant 0 : i32
    %c0_i32_0 = arith.constant 0 : i32
    %c0_i32_1 = arith.constant 0 : i32
    return %c0_i32, %c0_i32_0 : i32, i32
  }
  func.func @transform_8(%arg0: i32) -> (i32, i32, i32) {
    %c0_i32 = arith.constant 0 : i32
    %c0_i32_0 = arith.constant 0 : i32
    %c0_i32_1 = arith.constant 0 : i32
    %c0_i32_2 = arith.constant 0 : i32
    return %c0_i32, %c0_i32_0, %c0_i32_1 : i32, i32, i32
  }
  func.func @transform_9(%arg0: i32) -> (i32, i32) {
    %c0_i32 = arith.constant 0 : i32
    %c0_i32_0 = arith.constant 0 : i32
    %c0_i32_1 = arith.constant 0 : i32
    return %c0_i32, %c0_i32_0 : i32, i32
  }
  func.func @transform_10(%arg0: i32) -> (i32, i32, i32) {
    %c0_i32 = arith.constant 0 : i32
    %c0_i32_0 = arith.constant 0 : i32
    %c0_i32_1 = arith.constant 0 : i32
    return %arg0, %c0_i32, %c0_i32_0 : i32, i32, i32
  }
}

</mosaic_0001>

<llo_original>
// kernel: tpu_custom_call.1
$region0: #{tpu_custom_call.1}
  #allocation0 [shape = 'u32[]', space=smem, size = 0x4, offset = 0x4, fixed_abs, tag = 'smem constant byte address 0x4 - core index']
  #allocation1 [shape = 'u32[72,128]{1,0:T(1,128)}', space=vmem, size = 0x9000, scoped, tag = 'internal scratch']
  %s0 = inlined_call_operand.vmem [shape: f32[2,32,128], index: 0, kind: input, shape index: {}]
  %s1 = inlined_call_operand.vmem [shape: f32[8,16], index: 1, kind: input, shape index: {}]
  %s2 = inlined_call_operand.vmem [shape: f32[128,48], index: 2, kind: input, shape index: {}]
  %s3 = inlined_call_operand.vmem [shape: f32[1,48], index: 3, kind: input, shape index: {}]
  %s4 = inlined_call_operand.vmem [shape: f32[16,48], index: 4, kind: input, shape index: {}]
  %s5 = inlined_call_operand.vmem [shape: f32[1,48], index: 5, kind: input, shape index: {}]
  %s6 = inlined_call_operand.vmem [shape: f32[16,32], index: 6, kind: input, shape index: {}]
  %s7 = inlined_call_operand.vmem [shape: f32[1,32], index: 7, kind: input, shape index: {}]
  %s8 = inlined_call_operand.hbm [shape: f32[3,128,128], index: 8, kind: input, shape index: {}]
  %s9 = inlined_call_operand.vmem [shape: f32[1,128], index: 9, kind: input, shape index: {}]
  %s10 = inlined_call_operand.hbm [shape: f32[2,32,128], index: 10, kind: output, shape index: {}]
  %s11 = sld [smem:[#allocation0]]
  $region77: #{tpu_custom_call.1} parent=0
    _
  %s13 = ssub.s32 1, %s11
  %s14 = scalar_select 0, %s13, %s11
  $region1: #{tpu_custom_call.1} parent=0
    #allocation2 [shape = 'u8[196608]{0}', space=vmem, size = 0x30000, scoped, tag = 'input window, operand 8, single buffered']
    #allocation3 [shape = 's32[2]{0}', space=sflag, size = 0x8, scoped, tag = 'scoped memory for tpu_custom_call.1']
    #allocation4 [shape = 's32[2]{0}', space=sflag, size = 0x8, scoped, tag = 'scoped memory for tpu_custom_call.1']
    #allocation5 [shape = 'u8[32768]{0}', space=vmem, size = 0x8000, scoped, tag = 'output window, operand 0']
    %15 = vsyncpa [#allocation3], 0
    %16 = vsyncpa [#allocation4], 0
    %s17 = scalar_lea.sflag [#allocation4], 1
    %18 = vsyncpa %s17, 0
    loop: start=0, step=1, limit=4
    $region2: #{tpu_custom_call.1} parent=1 // loop_pre_header
      _
    $region3: #{tpu_custom_call.1} parent=1 // loop_header
      %s20 = sphi 0, %s24
      %p21 = scmp.ge.s32.totalorder %s20, 4
      %s30 = sphi 0, %s32
      %s33 = sphi 0, %s30
      %s34 = sphi 0, %s33
      %s50 = sphi 0, %s34
      %s54 = sphi 0, %s54
      %s56 = sphi 0, %s54
      %s57 = sphi 0, %s56
      %s71 = sphi 0, %s57
      %s75 = sphi 0, %s75
      %s77 = sphi 0, %s75
      %s78 = sphi 0, %s77
      %s92 = sphi 0, %s78
      %s96 = sphi 0, %s96
      %s98 = sphi 0, %s96
      %s99 = sphi 0, %s98
      %s113 = sphi 0, %s99
      %s117 = sphi 0, %s117
      %s119 = sphi 0, %s117
      %s120 = sphi 0, %s119
      %s134 = sphi 0, %s120
      %s138 = sphi 0, %s138
      %s140 = sphi 0, %s138
      %s141 = sphi 0, %s140
      %s155 = sphi 0, %s141
      %s159 = sphi 0, %s159
      %s161 = sphi 0, %s159
      %s162 = sphi 0, %s161
      %s176 = sphi 0, %s162
      %s180 = sphi 0, %s180
      %s182 = sphi 0, %s180
      %s183 = sphi 0, %s182
      %s197 = sphi 0, %s183
      %s201 = sphi 0, %s201
      %s203 = sphi 0, %s201
      %s204 = sphi 0, %s203
      %s218 = sphi 0, %s204
      %s222 = sphi 0, %s222
      %s224 = sphi 0, %s222
      %s225 = sphi 0, %s224
      %s239 = sphi 0, %s225
      %s245 = sphi 0, %s247
      %s248 = sphi 0, %s245
      %s249 = sphi 0, %s248
      %s265 = sphi 0, %s249
    $region4: #{tpu_custom_call.1} parent=1 // loop_header_branch
      %23 = sbr.rel (%p21) target = $region8
    $region5: #{tpu_custom_call.1} parent=1 // loop_body
      %s25 = ssub.s32 %s20, 1
      %s26 = ssub.s32 %s20, 2
      %s27 = sadd.s32 %s20, 1
      %s28 = ssub.s32 %s20, %s27
      %p29 = scmp.eq.s32.totalorder %s28, 0
      %s31 = sadd.s32 %s30, 1
      %s32 = scalar_select %p29, %s30, %s31
      %p35 = pneg %p29
      %p36 = scmp.eq.s32.totalorder %s20, 1
      %p37 = por %p35, %p36
      %p38 = scmp.ne.s32.totalorder %s30, %s33
      %p39 = scmp.eq.s32.totalorder %s20, 0
      %p40 = por %p38, %p39
      %p41 = scmp.ne.s32.totalorder %s30, %s33
      %p42 = scmp.eq.s32.totalorder %s25, 1
      %p43 = por %p41, %p42
      %p44 = scmp.ne.s32.totalorder %s33, %s34
      %p45 = scmp.eq.s32.totalorder %s25, 0
      %p46 = por %p44, %p45
      %p47 = scmp.ne.s32.totalorder %s33, %s34
      %p48 = scmp.eq.s32.totalorder %s26, 1
      %p49 = por %p47, %p48
      %p51 = scmp.ne.s32.totalorder %s34, %s50
      %p52 = scmp.eq.s32.totalorder %s26, 0
      %p53 = por %p51, %p52
      %s55 = sadd.s32 %s54, 1
      %p58 = scmp.eq.s32.totalorder %s20, 1
      %p59 = scmp.ne.s32.totalorder %s54, %s56
      %p60 = scmp.eq.s32.totalorder %s20, 0
      %p61 = por %p59, %p60
      %p62 = scmp.ne.s32.totalorder %s54, %s56
      %p63 = scmp.eq.s32.totalorder %s25, 1
      %p64 = por %p62, %p63
      %p65 = scmp.ne.s32.totalorder %s56, %s57
      %p66 = scmp.eq.s32.totalorder %s25, 0
      %p67 = por %p65, %p66
      %p68 = scmp.ne.s32.totalorder %s56, %s57
      %p69 = scmp.eq.s32.totalorder %s26, 1
      %p70 = por %p68, %p69
      %p72 = scmp.ne.s32.totalorder %s57, %s71
      %p73 = scmp.eq.s32.totalorder %s26, 0
      %p74 = por %p72, %p73
      %s76 = sadd.s32 %s75, 1
      %p79 = scmp.eq.s32.totalorder %s20, 1
      %p80 = scmp.ne.s32.totalorder %s75, %s77
      %p81 = scmp.eq.s32.totalorder %s20, 0
      %p82 = por %p80, %p81
      %p83 = scmp.ne.s32.totalorder %s75, %s77
      %p84 = scmp.eq.s32.totalorder %s25, 1
      %p85 = por %p83, %p84
      %p86 = scmp.ne.s32.totalorder %s77, %s78
      %p87 = scmp.eq.s32.totalorder %s25, 0
      %p88 = por %p86, %p87
      %p89 = scmp.ne.s32.totalorder %s77, %s78
      %p90 = scmp.eq.s32.totalorder %s26, 1
      %p91 = por %p89, %p90
      %p93 = scmp.ne.s32.totalorder %s78, %s92
      %p94 = scmp.eq.s32.totalorder %s26, 0
      %p95 = por %p93, %p94
      %s97 = sadd.s32 %s96, 1
      %p100 = scmp.eq.s32.totalorder %s20, 1
      %p101 = scmp.ne.s32.totalorder %s96, %s98
      %p102 = scmp.eq.s32.totalorder %s20, 0
      %p103 = por %p101, %p102
      %p104 = scmp.ne.s32.totalorder %s96, %s98
      %p105 = scmp.eq.s32.totalorder %s25, 1
      %p106 = por %p104, %p105
      %p107 = scmp.ne.s32.totalorder %s98, %s99
      %p108 = scmp.eq.s32.totalorder %s25, 0
      %p109 = por %p107, %p108
      %p110 = scmp.ne.s32.totalorder %s98, %s99
      %p111 = scmp.eq.s32.totalorder %s26, 1
      %p112 = por %p110, %p111
      %p114 = scmp.ne.s32.totalorder %s99, %s113
      %p115 = scmp.eq.s32.totalorder %s26, 0
      %p116 = por %p114, %p115
      %s118 = sadd.s32 %s117, 1
      %p121 = scmp.eq.s32.totalorder %s20, 1
      %p122 = scmp.ne.s32.totalorder %s117, %s119
      %p123 = scmp.eq.s32.totalorder %s20, 0
      %p124 = por %p122, %p123
      %p125 = scmp.ne.s32.totalorder %s117, %s119
      %p126 = scmp.eq.s32.totalorder %s25, 1
      %p127 = por %p125, %p126
      %p128 = scmp.ne.s32.totalorder %s119, %s120
      %p129 = scmp.eq.s32.totalorder %s25, 0
      %p130 = por %p128, %p129
      %p131 = scmp.ne.s32.totalorder %s119, %s120
      %p132 = scmp.eq.s32.totalorder %s26, 1
      %p133 = por %p131, %p132
      %p135 = scmp.ne.s32.totalorder %s120, %s134
      %p136 = scmp.eq.s32.totalorder %s26, 0
      %p137 = por %p135, %p136
      %s139 = sadd.s32 %s138, 1
      %p142 = scmp.eq.s32.totalorder %s20, 1
      %p143 = scmp.ne.s32.totalorder %s138, %s140
      %p144 = scmp.eq.s32.totalorder %s20, 0
      %p145 = por %p143, %p144
      %p146 = scmp.ne.s32.totalorder %s138, %s140
      %p147 = scmp.eq.s32.totalorder %s25, 1
      %p148 = por %p146, %p147
      %p149 = scmp.ne.s32.totalorder %s140, %s141
      %p150 = scmp.eq.s32.totalorder %s25, 0
      %p151 = por %p149, %p150
      %p152 = scmp.ne.s32.totalorder %s140, %s141
      %p153 = scmp.eq.s32.totalorder %s26, 1
      %p154 = por %p152, %p153
      %p156 = scmp.ne.s32.totalorder %s141, %s155
      %p157 = scmp.eq.s32.totalorder %s26, 0
      %p158 = por %p156, %p157
      %s160 = sadd.s32 %s159, 1
      %p163 = scmp.eq.s32.totalorder %s20, 1
      %p164 = scmp.ne.s32.totalorder %s159, %s161
      %p165 = scmp.eq.s32.totalorder %s20, 0
      %p166 = por %p164, %p165
      %p167 = scmp.ne.s32.totalorder %s159, %s161
      %p168 = scmp.eq.s32.totalorder %s25, 1
      %p169 = por %p167, %p168
      %p170 = scmp.ne.s32.totalorder %s161, %s162
      %p171 = scmp.eq.s32.totalorder %s25, 0
      %p172 = por %p170, %p171
      %p173 = scmp.ne.s32.totalorder %s161, %s162
      %p174 = scmp.eq.s32.totalorder %s26, 1
      %p175 = por %p173, %p174
      %p177 = scmp.ne.s32.totalorder %s162, %s176
      %p178 = scmp.eq.s32.totalorder %s26, 0
      %p179 = por %p177, %p178
      %s181 = sadd.s32 %s180, 1
      %p184 = scmp.eq.s32.totalorder %s20, 1
      %p185 = scmp.ne.s32.totalorder %s180, %s182
      %p186 = scmp.eq.s32.totalorder %s20, 0
      %p187 = por %p185, %p186
      %p188 = scmp.ne.s32.totalorder %s180, %s182
      %p189 = scmp.eq.s32.totalorder %s25, 1
      %p190 = por %p188, %p189
      %p191 = scmp.ne.s32.totalorder %s182, %s183
      %p192 = scmp.eq.s32.totalorder %s25, 0
      %p193 = por %p191, %p192
      %p194 = scmp.ne.s32.totalorder %s182, %s183
      %p195 = scmp.eq.s32.totalorder %s26, 1
      %p196 = por %p194, %p195
      %p198 = scmp.ne.s32.totalorder %s183, %s197
      %p199 = scmp.eq.s32.totalorder %s26, 0
      %p200 = por %p198, %p199
      %s202 = sadd.s32 %s201, 1
      %p205 = scmp.eq.s32.totalorder %s20, 1
      %p206 = scmp.ne.s32.totalorder %s201, %s203
      %p207 = scmp.eq.s32.totalorder %s20, 0
      %p208 = por %p206, %p207
      %p209 = scmp.ne.s32.totalorder %s201, %s203
      %p210 = scmp.eq.s32.totalorder %s25, 1
      %p211 = por %p209, %p210
      %p212 = scmp.ne.s32.totalorder %s203, %s204
      %p213 = scmp.eq.s32.totalorder %s25, 0
      %p214 = por %p212, %p213
      %p215 = scmp.ne.s32.totalorder %s203, %s204
      %p216 = scmp.eq.s32.totalorder %s26, 1
      %p217 = por %p215, %p216
      %p219 = scmp.ne.s32.totalorder %s204, %s218
      %p220 = scmp.eq.s32.totalorder %s26, 0
      %p221 = por %p219, %p220
      %s223 = sadd.s32 %s222, 1
      %p226 = scmp.eq.s32.totalorder %s20, 1
      %p227 = scmp.ne.s32.totalorder %s222, %s224
      %p228 = scmp.eq.s32.totalorder %s20, 0
      %p229 = por %p227, %p228
      %p230 = scmp.ne.s32.totalorder %s222, %s224
      %p231 = scmp.eq.s32.totalorder %s25, 1
      %p232 = por %p230, %p231
      %p233 = scmp.ne.s32.totalorder %s224, %s225
      %p234 = scmp.eq.s32.totalorder %s25, 0
      %p235 = por %p233, %p234
      %p236 = scmp.ne.s32.totalorder %s224, %s225
      %p237 = scmp.eq.s32.totalorder %s26, 1
      %p238 = por %p236, %p237
      %p240 = scmp.ne.s32.totalorder %s225, %s239
      %p241 = scmp.eq.s32.totalorder %s26, 0
      %p242 = por %p240, %p241
      %s243 = ssub.s32 %s20, %s27
      %p244 = scmp.eq.s32.totalorder %s243, 0
      %s246 = sadd.s32 %s245, 1
      %s247 = scalar_select %p244, %s245, %s246
      %p250 = pneg %p244
      %p251 = scmp.eq.s32.totalorder %s20, 1
      %p252 = por %p250, %p251
      %p253 = scmp.ne.s32.totalorder %s245, %s248
      %p254 = scmp.eq.s32.totalorder %s20, 0
      %p255 = por %p253, %p254
      %p256 = scmp.ne.s32.totalorder %s245, %s248
      %p257 = scmp.eq.s32.totalorder %s25, 1
      %p258 = por %p256, %p257
      %p259 = scmp.ne.s32.totalorder %s248, %s249
      %p260 = scmp.eq.s32.totalorder %s25, 0
      %p261 = por %p259, %p260
      %p262 = scmp.ne.s32.totalorder %s248, %s249
      %p263 = scmp.eq.s32.totalorder %s26, 1
      %p264 = por %p262, %p263
      %p266 = scmp.ne.s32.totalorder %s249, %s265
      %p267 = scmp.eq.s32.totalorder %s26, 0
      %p268 = por %p266, %p267
      %p269 = scmp.le.s32.totalorder 1, %s20
      %p270 = scmp.lt.s32.totalorder %s20, 3
      %p271 = pnand %p269, %p270
      %p272 = pneg %p271
      // Predicated region
      $region9: #{tpu_custom_call.1} parent=5 // pred_check
        _
      $region10: #{tpu_custom_call.1} parent=5 // pred_check_branch
        %274 = sbr.rel (%p271) target = $region12
      $region11: #{tpu_custom_call.1} parent=5 // pred_region
        %s275 = ssub.s32 %s20, 1
        // Predicated region
        $region13: #{tpu_custom_call.1} parent=11 // pred_check
          %p276 = pneg %p67
        $region14: #{tpu_custom_call.1} parent=11 // pred_check_branch
          %278 = sbr.rel (%p276) target = $region16
        $region15: #{tpu_custom_call.1} parent=11 // pred_region
          _
        $region16: #{tpu_custom_call.1} parent=11 // pred_fallthru
          _
        // Predicated region
        $region17: #{tpu_custom_call.1} parent=11 // pred_check
          %p279 = pneg %p88
        $region18: #{tpu_custom_call.1} parent=11 // pred_check_branch
          %281 = sbr.rel (%p279) target = $region20
        $region19: #{tpu_custom_call.1} parent=11 // pred_region
          _
        $region20: #{tpu_custom_call.1} parent=11 // pred_fallthru
          _
        // Predicated region
        $region21: #{tpu_custom_call.1} parent=11 // pred_check
          %p282 = pneg %p109
        $region22: #{tpu_custom_call.1} parent=11 // pred_check_branch
          %284 = sbr.rel (%p282) target = $region24
        $region23: #{tpu_custom_call.1} parent=11 // pred_region
          _
        $region24: #{tpu_custom_call.1} parent=11 // pred_fallthru
          _
        // Predicated region
        $region25: #{tpu_custom_call.1} parent=11 // pred_check
          %p285 = pneg %p130
        $region26: #{tpu_custom_call.1} parent=11 // pred_check_branch
          %287 = sbr.rel (%p285) target = $region28
        $region27: #{tpu_custom_call.1} parent=11 // pred_region
          _
        $region28: #{tpu_custom_call.1} parent=11 // pred_fallthru
          _
        // Predicated region
        $region29: #{tpu_custom_call.1} parent=11 // pred_check
          %p288 = pneg %p151
        $region30: #{tpu_custom_call.1} parent=11 // pred_check_branch
          %290 = sbr.rel (%p288) target = $region32
        $region31: #{tpu_custom_call.1} parent=11 // pred_region
          _
        $region32: #{tpu_custom_call.1} parent=11 // pred_fallthru
          _
        // Predicated region
        $region33: #{tpu_custom_call.1} parent=11 // pred_check
          %p291 = pneg %p172
        $region34: #{tpu_custom_call.1} parent=11 // pred_check_branch
          %293 = sbr.rel (%p291) target = $region36
        $region35: #{tpu_custom_call.1} parent=11 // pred_region
          _
        $region36: #{tpu_custom_call.1} parent=11 // pred_fallthru
          _
        // Predicated region
        $region37: #{tpu_custom_call.1} parent=11 // pred_check
          %p294 = pneg %p193
        $region38: #{tpu_custom_call.1} parent=11 // pred_check_branch
          %296 = sbr.rel (%p294) target = $region40
        $region39: #{tpu_custom_call.1} parent=11 // pred_region
          _
        $region40: #{tpu_custom_call.1} parent=11 // pred_fallthru
          _
        // Predicated region
        $region41: #{tpu_custom_call.1} parent=11 // pred_check
          %p297 = pneg %p214
        $region42: #{tpu_custom_call.1} parent=11 // pred_check_branch
          %299 = sbr.rel (%p297) target = $region44
        $region43: #{tpu_custom_call.1} parent=11 // pred_region
          %301 = vsyncadd [#allocation3], 0
          %s302 = sshll.u32 %s8, 4
          %s303 = int_to_ptr.hbm [resolvable:$true] %s302
          %s304 = sshll.u32 [#allocation2], 4
          %s305 = int_to_ptr.vmem [resolvable:$true] %s304
          %310 = dma.hbm_to_vmem [thread:$0]  %s303, 6144, %s305, [#allocation3], 128, 128, 8
        $region44: #{tpu_custom_call.1} parent=11 // pred_fallthru
          _
        // Predicated region
        $region45: #{tpu_custom_call.1} parent=11 // pred_check
          %p311 = pneg %p235
        $region46: #{tpu_custom_call.1} parent=11 // pred_check_branch
          %313 = sbr.rel (%p311) target = $region48
        $region47: #{tpu_custom_call.1} parent=11 // pred_region
          _
        $region48: #{tpu_custom_call.1} parent=11 // pred_fallthru
          _
      $region12: #{tpu_custom_call.1} parent=5 // pred_fallthru
        _
      %p314 = scmp.lt.s32.totalorder %s20, 2
      // Predicated region
      $region49: #{tpu_custom_call.1} parent=5 // pred_check
        %p315 = pneg %p314
      $region50: #{tpu_custom_call.1} parent=5 // pred_check_branch
        %317 = sbr.rel (%p315) target = $region52
      $region51: #{tpu_custom_call.1} parent=5 // pred_region
        // Predicated region
        $region53: #{tpu_custom_call.1} parent=51 // pred_check
          %p318 = pneg %p40
        $region54: #{tpu_custom_call.1} parent=51 // pred_check_branch
          %320 = sbr.rel (%p318) target = $region56
        $region55: #{tpu_custom_call.1} parent=51 // pred_region
          %p321 = scmp.lt.s32.totalorder %s20, 1
          %s322 = scalar_select %p321, %s20, 1
          %s323 = smul.addr %s322, 4
          %s324 = smul.addr %s323, 8
          %s325 = scalar_lea.vmem %s0, %s324
        $region56: #{tpu_custom_call.1} parent=51 // pred_fallthru
          _
      $region52: #{tpu_custom_call.1} parent=5 // pred_fallthru
        _
      %p326 = scmp.le.s32.totalorder 1, %s20
      %p327 = scmp.lt.s32.totalorder %s20, 3
      %p328 = pnand %p326, %p327
      %p329 = pneg %p328
      // Predicated region
      $region57: #{tpu_custom_call.1} parent=5 // pred_check
        _
      $region58: #{tpu_custom_call.1} parent=5 // pred_check_branch
        %331 = sbr.rel (%p328) target = $region60
      $region59: #{tpu_custom_call.1} parent=5 // pred_region
        %s332 = ssub.s32 %s20, 1
        // Predicated region
        $region61: #{tpu_custom_call.1} parent=59 // pred_check
          %p333 = pneg %p214
        $region62: #{tpu_custom_call.1} parent=59 // pred_check_branch
          %335 = sbr.rel (%p333) target = $region64
        $region63: #{tpu_custom_call.1} parent=59 // pred_region
          %337 = dma.done [#allocation3], 6144
        $region64: #{tpu_custom_call.1} parent=59 // pred_fallthru
          _
        %p338 = scmp.lt.s32.totalorder %s25, 1
        %s339 = scalar_select %p338, %s25, 1
        %s340 = smul.addr %s339, 4
        %s341 = smul.addr %s340, 8
        %s342 = scalar_lea.vmem %s0, %s341
        %p343 = pneg %p46
        %p344 = pneg %p43
        %p345 = pneg %p67
        %p346 = pneg %p64
        %p347 = pneg %p88
        %p348 = pneg %p85
        %p349 = pneg %p109
        %p350 = pneg %p106
        %p351 = pneg %p130
        %p352 = pneg %p127
        %p353 = pneg %p151
        %p354 = pneg %p148
        %p355 = pneg %p172
        %p356 = pneg %p169
        %p357 = pneg %p193
        %p358 = pneg %p190
        %p359 = pneg %p214
        %p360 = pneg %p211
        %p361 = pneg %p235
        %p362 = pneg %p232
        %p363 = pneg %p261
        %p364 = pneg %p258
        %s365 = sand.u32 %s248, 1
        %s366 = scalar_lea.sflag [#allocation4], %s365
        %s367 = sand.u32 %s248, 1
        %s368 = smul.addr %s367, 32
        %s369 = scalar_lea.vmem [#allocation5], %s368
        %p370 = scmp.lt.s32.totalorder %s25, 1
        %s371 = scalar_select %p370, %s25, 1
        %s372 = smul.addr %s371, 4
        %s373 = smul.addr %s372, 8
        %s374 = scalar_lea.vmem %s0, %s373
        %v375 = vld [vmem:[%s374] sm:$0xff]
        %v376 = vld [vmem:[%s374 + $0x8] sm:$0xff]
        %v377 = vld [vmem:[%s374 + $0x10] sm:$0xff]
        %v378 = vld [vmem:[%s374 + $0x18] sm:$0xff]
        %v379 = vld [vmem:[%s4] sm:$0xff]
        %v380 = vld [vmem:[%s4 + $0x8] sm:$0xff]
        %v381 = vld [vmem:[%s5] sm:$0x1]
        %v382 = vld [vmem:[%s6] sm:$0xff]
        %v383 = vld [vmem:[%s6 + $0x8] sm:$0xff]
        %v384 = vld [vmem:[%s7] sm:$0x1]
        %v385 = vld [vmem:[%s2] sm:$0xff]
        %v386 = vld [vmem:[%s2 + $0x8] sm:$0xff]
        %v387 = vld [vmem:[%s2 + $0x10] sm:$0xff]
        %v388 = vld [vmem:[%s2 + $0x18] sm:$0xff]
        %v389 = vld [vmem:[%s2 + $0x20] sm:$0xff]
        %v390 = vld [vmem:[%s2 + $0x28] sm:$0xff]
        %v391 = vld [vmem:[%s2 + $0x30] sm:$0xff]
        %v392 = vld [vmem:[%s2 + $0x38] sm:$0xff]
        %v393 = vld [vmem:[%s2 + $0x40] sm:$0xff]
        %v394 = vld [vmem:[%s2 + $0x48] sm:$0xff]
        %v395 = vld [vmem:[%s2 + $0x50] sm:$0xff]
        %v396 = vld [vmem:[%s2 + $0x58] sm:$0xff]
        %v397 = vld [vmem:[%s2 + $0x60] sm:$0xff]
        %v398 = vld [vmem:[%s2 + $0x68] sm:$0xff]
        %v399 = vld [vmem:[%s2 + $0x70] sm:$0xff]
        %v400 = vld [vmem:[%s2 + $0x78] sm:$0xff]
        %v401 = vld [vmem:[%s3] sm:$0x1]
        %v403 = vperm.slane %v401, 0
        %405 = vmatpush.msra.mxu0 %v400
        %406 = vmatpush.msra.mxu0 %v399
        %407 = vmatpush.msra.mxu0 %v398
        %408 = vmatpush.msra.mxu0 %v397
        %409 = vmatpush.msra.mxu0 %v396
        %410 = vmatpush.msra.mxu0 %v395
        %411 = vmatpush.msra.mxu0 %v394
        %412 = vmatpush.msra.mxu0 %v393
        %413 = vmatpush.msra.mxu0 %v392
        %414 = vmatpush.msra.mxu0 %v391
        %415 = vmatpush.msra.mxu0 %v390
        %416 = vmatpush.msra.mxu0 %v389
        %417 = vmatpush.msra.mxu0 %v388
        %418 = vmatpush.msra.mxu0 %v387
        %419 = vmatpush.msra.mxu0 %v386
        %420 = vmatpush.msra.mxu0 %v385
        %421 = vmatmul.f32.gmra.mxu0 %v375
        %v422 = vpop.f32.mrf.mxu0
        %v423 = vadd.f32 %v403, %v422
        %424 = vmatmul.f32.gmra.mxu0 %v376
        %v425 = vpop.f32.mrf.mxu0
        %v426 = vadd.f32 %v403, %v425
        %427 = vmatmul.f32.gmra.mxu0 %v377
        %v428 = vpop.f32.mrf.mxu0
        %v429 = vadd.f32 %v403, %v428
        %430 = vmatmul.f32.gmra.mxu0 %v378
        %v431 = vpop.f32.mrf.mxu0
        %v432 = vadd.f32 %v403, %v431
        %433 = vdwg.mxu0
        %v434 = vld [vmem:[%s1] sm:$0xff]
        %v436 = vperm.slane %v381, 0
        %vm438 = vcmask 130048
        %v440 = vsel %vm438, %v434, 0
        %442 = vmatpush.msra.mxu0 0.0
        %443 = vmatpush.msra.mxu0 0.0
        %444 = vmatpush.msra.mxu0 0.0
        %445 = vmatpush.msra.mxu0 0.0
        %446 = vmatpush.msra.mxu0 0.0
        %447 = vmatpush.msra.mxu0 0.0
        %448 = vmatpush.msra.mxu0 0.0
        %449 = vmatpush.msra.mxu0 0.0
        %450 = vmatpush.msra.mxu0 0.0
        %451 = vmatpush.msra.mxu0 0.0
        %452 = vmatpush.msra.mxu0 0.0
        %453 = vmatpush.msra.mxu0 0.0
        %454 = vmatpush.msra.mxu0 0.0
        %455 = vmatpush.msra.mxu0 0.0
        %456 = vmatpush.msra.mxu0 %v380
        %457 = vmatpush.msra.mxu0 %v379
        %458 = vmatmul.f32.gmra.mxu0 %v440
        %v459 = vpop.f32.mrf.mxu0
        %v460 = vadd.f32 %v436, %v459
        %461 = vdwg.mxu0
        %v462 = vadd.f32 %v423, %v460
        %v463 = vxor.u32 %v462, 2147483648
        %v464 = vmul.f32 %v463, 1.442695
        %v465 = vpow.pop %v464
        %v466 = vadd.f32 %v465, 1.0
        %v467 = vrcp.pop %v466
        %v468 = vmul.f32 %v466, %v467
        %v469 = vsub.f32 1.0, %v468
        %v470 = vmul.f32 %v467, %v469
        %v471 = vadd.f32 %v467, %v470
        %vm472 = vweird.f32 %v466
        %vm473 = vweird.f32 %v467
        %vm474 = vmor %vm472, %vm473
        %v475 = vsel %vm474, %v467, %v471
        %v476 = vand.u32 2147483647, %v466
        %vm477 = vcmp.eq.f32.partialorder %v476, 8.507059e+37
        %v478 = vand.u32 %v466, 2147483648
        %v479 = vor.u32 1.1754944e-38, %v478
        %v480 = vsel %vm477, %v479, %v475
        %v481 = vmul.f32 1.0, %v480
        %483 = vrot.lane.b32.xlu0 %v460, 96
        %v484 = vpop.permute.xlu0 %483
        %v486 = vmul.f32 %v481, %v484
        %488 = vrot.lane.b32.xlu0 %v486, 32
        %v489 = vpop.permute.xlu0 %488
        %v491 = vadd.f32 %v423, %v489
        %v492 = vtanh.pop %v491
        %v493 = vsub.f32 1.0, %v481
        %495 = vrot.lane.b32.xlu0 %v492, 112
        %v496 = vpop.permute.xlu0 %495
        %v498 = vmul.f32 %v493, %v496
        %499 = vrot.lane.b32.xlu0 %v434, 16
        %v500 = vpop.permute.xlu0 %499
        %v502 = vmul.f32 %v481, %v500
        %v503 = vadd.f32 %v498, %v502
        %v505 = vperm.slane %v384, 0
        %508 = vrot.lane.b32.xlu0 %v503, 112
        %v509 = vpop.permute.xlu0 %508
        %v510 = vsel %vm438, %v509, 0
        %512 = vmatpush.msra.mxu0 0.0
        %513 = vmatpush.msra.mxu0 0.0
        %514 = vmatpush.msra.mxu0 0.0
        %515 = vmatpush.msra.mxu0 0.0
        %516 = vmatpush.msra.mxu0 0.0
        %517 = vmatpush.msra.mxu0 0.0
        %518 = vmatpush.msra.mxu0 0.0
        %519 = vmatpush.msra.mxu0 0.0
        %520 = vmatpush.msra.mxu0 0.0
        %521 = vmatpush.msra.mxu0 0.0
        %522 = vmatpush.msra.mxu0 0.0
        %523 = vmatpush.msra.mxu0 0.0
        %524 = vmatpush.msra.mxu0 0.0
        %525 = vmatpush.msra.mxu0 0.0
        %526 = vmatpush.msra.mxu0 %v383
        %527 = vmatpush.msra.mxu0 %v382
        %528 = vmatmul.f32.gmra.mxu0 %v510
        %v529 = vpop.f32.mrf.mxu0
        %v530 = vadd.f32 %v505, %v529
        %531 = vdwg.mxu0
        %v532 = vtanh.pop %v530
        %534 = vrot.lane.b32.xlu0 %v532, 112
        %v535 = vpop.permute.xlu0 %534
        %v536 = vsel %vm438, %v532, 0
        %v538 = vsel %vm438, %v535, 0
        %540 = vmatpush.xpose.msra.mxu0 0.0
        %541 = vmatpush.xpose.msra.mxu0 0.0
        %542 = vmatpush.xpose.msra.mxu0 0.0
        %543 = vmatpush.xpose.msra.mxu0 0.0
        %544 = vmatpush.xpose.msra.mxu0 0.0
        %545 = vmatpush.xpose.msra.mxu0 0.0
        %546 = vmatpush.xpose.msra.mxu0 0.0
        %547 = vmatpush.xpose.msra.mxu0 0.0
        %548 = vmatpush.xpose.msra.mxu0 0.0
        %549 = vmatpush.xpose.msra.mxu0 0.0
        %550 = vmatpush.xpose.msra.mxu0 0.0
        %551 = vmatpush.xpose.msra.mxu0 0.0
        %552 = vmatpush.xpose.msra.mxu0 0.0
        %553 = vmatpush.xpose.msra.mxu0 0.0
        %554 = vmatpush.xpose.msra.mxu0 0.0
        %555 = vmatpush.xpose.msra.mxu0 %v538
        %556 = vmatmul.f32.gmra.mxu0 %v536
        %v557 = vpop.f32.mrf.mxu0
        %v558 = vadd.f32 0.0, %v557
        %559 = vdwg.mxu0
        %v560 = vmax.f32 %v558, 0.0
        %vm561 = vcmask 64512
        %v562 = vsel %vm561, %v560, -inf
        %563 = vmax.xlane.f32.xlu0 %v562
        %v564 = vpop.xlane.xlu0 %563
        %v565 = vsub.f32 %v560, %v564
        %v566 = vmul.f32 %v565, 1.442695
        %v567 = vpow.pop %v566
        %v568 = vsel %vm561, %v567, 0.0
        %569 = vadd.xlane.f32.xlu0 %v568
        %v570 = vpop.xlane.xlu0 %569
        %v571 = vrcp.pop %v570
        %v572 = vmul.f32 %v570, %v571
        %v573 = vsub.f32 1.0, %v572
        %v574 = vmul.f32 %v571, %v573
        %v575 = vadd.f32 %v571, %v574
        %vm576 = vweird.f32 %v570
        %vm577 = vweird.f32 %v571
        %vm578 = vmor %vm576, %vm577
        %v579 = vsel %vm578, %v571, %v575
        %v580 = vand.u32 2147483647, %v570
        %vm581 = vcmp.eq.f32.partialorder %v580, 8.507059e+37
        %v582 = vand.u32 %v570, 2147483648
        %v583 = vor.u32 1.1754944e-38, %v582
        %v584 = vsel %vm581, %v583, %v579
        %v585 = vmul.f32 %v567, %v584
        %586 = vmatpush.msra.mxu0 0.0
        %587 = vmatpush.msra.mxu0 0.0
        %588 = vmatpush.msra.mxu0 0.0
        %589 = vmatpush.msra.mxu0 0.0
        %590 = vmatpush.msra.mxu0 0.0
        %591 = vmatpush.msra.mxu0 0.0
        %592 = vmatpush.msra.mxu0 0.0
        %593 = vmatpush.msra.mxu0 0.0
        %594 = vmatpush.msra.mxu0 0.0
        %595 = vmatpush.msra.mxu0 0.0
        %596 = vmatpush.msra.mxu0 0.0
        %597 = vmatpush.msra.mxu0 0.0
        %598 = vmatpush.msra.mxu0 0.0
        %599 = vmatpush.msra.mxu0 0.0
        %600 = vmatpush.msra.mxu0 %v380
        %601 = vmatpush.msra.mxu0 %v379
        %602 = vmatmul.f32.gmra.mxu0 %v510
        %v603 = vpop.f32.mrf.mxu0
        %v604 = vadd.f32 %v436, %v603
        %605 = vdwg.mxu0
        %v606 = vadd.f32 %v426, %v604
        %v607 = vxor.u32 %v606, 2147483648
        %v608 = vmul.f32 %v607, 1.442695
        %v609 = vpow.pop %v608
        %v610 = vadd.f32 %v609, 1.0
        %v611 = vrcp.pop %v610
        %v612 = vmul.f32 %v610, %v611
        %v613 = vsub.f32 1.0, %v612
        %v614 = vmul.f32 %v611, %v613
        %v615 = vadd.f32 %v611, %v614
        %vm616 = vweird.f32 %v610
        %vm617 = vweird.f32 %v611
        %vm618 = vmor %vm616, %vm617
        %v619 = vsel %vm618, %v611, %v615
        %v620 = vand.u32 2147483647, %v610
        %vm621 = vcmp.eq.f32.partialorder %v620, 8.507059e+37
        %v622 = vand.u32 %v610, 2147483648
        %v623 = vor.u32 1.1754944e-38, %v622
        %v624 = vsel %vm621, %v623, %v619
        %v625 = vmul.f32 1.0, %v624
        %627 = vrot.lane.b32.xlu0 %v604, 96
        %v628 = vpop.permute.xlu0 %627
        %v630 = vmul.f32 %v625, %v628
        %632 = vrot.lane.b32.xlu0 %v630, 32
        %v633 = vpop.permute.xlu0 %632
        %v635 = vadd.f32 %v426, %v633
        %v636 = vtanh.pop %v635
        %v637 = vsub.f32 1.0, %v625
        %639 = vrot.lane.b32.xlu0 %v636, 112
        %v640 = vpop.permute.xlu0 %639
        %v642 = vmul.f32 %v637, %v640
        %v643 = vmul.f32 %v625, %v503
        %v644 = vadd.f32 %v642, %v643
        %646 = vrot.lane.b32.xlu0 %v644, 112
        %v647 = vpop.permute.xlu0 %646
        %v648 = vsel %vm438, %v647, 0
        %650 = vmatpush.msra.mxu0 0.0
        %651 = vmatpush.msra.mxu0 0.0
        %652 = vmatpush.msra.mxu0 0.0
        %653 = vmatpush.msra.mxu0 0.0
        %654 = vmatpush.msra.mxu0 0.0
        %655 = vmatpush.msra.mxu0 0.0
        %656 = vmatpush.msra.mxu0 0.0
        %657 = vmatpush.msra.mxu0 0.0
        %658 = vmatpush.msra.mxu0 0.0
        %659 = vmatpush.msra.mxu0 0.0
        %660 = vmatpush.msra.mxu0 0.0
        %661 = vmatpush.msra.mxu0 0.0
        %662 = vmatpush.msra.mxu0 0.0
        %663 = vmatpush.msra.mxu0 0.0
        %664 = vmatpush.msra.mxu0 %v383
        %665 = vmatpush.msra.mxu0 %v382
        %666 = vmatmul.f32.gmra.mxu0 %v648
        %v667 = vpop.f32.mrf.mxu0
        %v668 = vadd.f32 %v505, %v667
        %669 = vdwg.mxu0
        %v670 = vtanh.pop %v668
        %672 = vrot.lane.b32.xlu0 %v670, 112
        %v673 = vpop.permute.xlu0 %672
        %v674 = vsel %vm438, %v670, 0
        %v676 = vsel %vm438, %v673, 0
        %678 = vmatpush.xpose.msra.mxu0 0.0
        %679 = vmatpush.xpose.msra.mxu0 0.0
        %680 = vmatpush.xpose.msra.mxu0 0.0
        %681 = vmatpush.xpose.msra.mxu0 0.0
        %682 = vmatpush.xpose.msra.mxu0 0.0
        %683 = vmatpush.xpose.msra.mxu0 0.0
        %684 = vmatpush.xpose.msra.mxu0 0.0
        %685 = vmatpush.xpose.msra.mxu0 0.0
        %686 = vmatpush.xpose.msra.mxu0 0.0
        %687 = vmatpush.xpose.msra.mxu0 0.0
        %688 = vmatpush.xpose.msra.mxu0 0.0
        %689 = vmatpush.xpose.msra.mxu0 0.0
        %690 = vmatpush.xpose.msra.mxu0 0.0
        %691 = vmatpush.xpose.msra.mxu0 0.0
        %692 = vmatpush.xpose.msra.mxu0 0.0
        %693 = vmatpush.xpose.msra.mxu0 %v676
        %694 = vmatmul.f32.gmra.mxu0 %v674
        %v695 = vpop.f32.mrf.mxu0
        %v696 = vadd.f32 0.0, %v695
        %697 = vdwg.mxu0
        %v698 = vmax.f32 %v696, 0.0
        %v699 = vsel %vm561, %v698, -inf
        %700 = vmax.xlane.f32.xlu0 %v699
        %v701 = vpop.xlane.xlu0 %700
        %v702 = vsub.f32 %v698, %v701
        %v703 = vmul.f32 %v702, 1.442695
        %v704 = vpow.pop %v703
        %v705 = vsel %vm561, %v704, 0.0
        %706 = vadd.xlane.f32.xlu0 %v705
        %v707 = vpop.xlane.xlu0 %706
        %v708 = vrcp.pop %v707
        %v709 = vmul.f32 %v707, %v708
        %v710 = vsub.f32 1.0, %v709
        %v711 = vmul.f32 %v708, %v710
        %v712 = vadd.f32 %v708, %v711
        %vm713 = vweird.f32 %v707
        %vm714 = vweird.f32 %v708
        %vm715 = vmor %vm713, %vm714
        %v716 = vsel %vm715, %v708, %v712
        %v717 = vand.u32 2147483647, %v707
        %vm718 = vcmp.eq.f32.partialorder %v717, 8.507059e+37
        %v719 = vand.u32 %v707, 2147483648
        %v720 = vor.u32 1.1754944e-38, %v719
        %v721 = vsel %vm718, %v720, %v716
        %v722 = vmul.f32 %v704, %v721
        %723 = vmatpush.msra.mxu0 0.0
        %724 = vmatpush.msra.mxu0 0.0
        %725 = vmatpush.msra.mxu0 0.0
        %726 = vmatpush.msra.mxu0 0.0
        %727 = vmatpush.msra.mxu0 0.0
        %728 = vmatpush.msra.mxu0 0.0
        %729 = vmatpush.msra.mxu0 0.0
        %730 = vmatpush.msra.mxu0 0.0
        %731 = vmatpush.msra.mxu0 0.0
        %732 = vmatpush.msra.mxu0 0.0
        %733 = vmatpush.msra.mxu0 0.0
        %734 = vmatpush.msra.mxu0 0.0
        %735 = vmatpush.msra.mxu0 0.0
        %736 = vmatpush.msra.mxu0 0.0
        %737 = vmatpush.msra.mxu0 %v380
        %738 = vmatpush.msra.mxu0 %v379
        %739 = vmatmul.f32.gmra.mxu0 %v648
        %v740 = vpop.f32.mrf.mxu0
        %v741 = vadd.f32 %v436, %v740
        %742 = vdwg.mxu0
        %v743 = vadd.f32 %v429, %v741
        %v744 = vxor.u32 %v743, 2147483648
        %v745 = vmul.f32 %v744, 1.442695
        %v746 = vpow.pop %v745
        %v747 = vadd.f32 %v746, 1.0
        %v748 = vrcp.pop %v747
        %v749 = vmul.f32 %v747, %v748
        %v750 = vsub.f32 1.0, %v749
        %v751 = vmul.f32 %v748, %v750
        %v752 = vadd.f32 %v748, %v751
        %vm753 = vweird.f32 %v747
        %vm754 = vweird.f32 %v748
        %vm755 = vmor %vm753, %vm754
        %v756 = vsel %vm755, %v748, %v752
        %v757 = vand.u32 2147483647, %v747
        %vm758 = vcmp.eq.f32.partialorder %v757, 8.507059e+37
        %v759 = vand.u32 %v747, 2147483648
        %v760 = vor.u32 1.1754944e-38, %v759
        %v761 = vsel %vm758, %v760, %v756
        %v762 = vmul.f32 1.0, %v761
        %764 = vrot.lane.b32.xlu0 %v741, 96
        %v765 = vpop.permute.xlu0 %764
        %v767 = vmul.f32 %v762, %v765
        %769 = vrot.lane.b32.xlu0 %v767, 32
        %v770 = vpop.permute.xlu0 %769
        %v772 = vadd.f32 %v429, %v770
        %v773 = vtanh.pop %v772
        %v774 = vsub.f32 1.0, %v762
        %776 = vrot.lane.b32.xlu0 %v773, 112
        %v777 = vpop.permute.xlu0 %776
        %v779 = vmul.f32 %v774, %v777
        %v780 = vmul.f32 %v762, %v644
        %v781 = vadd.f32 %v779, %v780
        %783 = vrot.lane.b32.xlu0 %v781, 112
        %v784 = vpop.permute.xlu0 %783
        %v785 = vsel %vm438, %v784, 0
        %787 = vmatpush.msra.mxu0 0.0
        %788 = vmatpush.msra.mxu0 0.0
        %789 = vmatpush.msra.mxu0 0.0
        %790 = vmatpush.msra.mxu0 0.0
        %791 = vmatpush.msra.mxu0 0.0
        %792 = vmatpush.msra.mxu0 0.0
        %793 = vmatpush.msra.mxu0 0.0
        %794 = vmatpush.msra.mxu0 0.0
        %795 = vmatpush.msra.mxu0 0.0
        %796 = vmatpush.msra.mxu0 0.0
        %797 = vmatpush.msra.mxu0 0.0
        %798 = vmatpush.msra.mxu0 0.0
        %799 = vmatpush.msra.mxu0 0.0
        %800 = vmatpush.msra.mxu0 0.0
        %801 = vmatpush.msra.mxu0 %v383
        %802 = vmatpush.msra.mxu0 %v382
        %803 = vmatmul.f32.gmra.mxu0 %v785
        %v804 = vpop.f32.mrf.mxu0
        %v805 = vadd.f32 %v505, %v804
        %806 = vdwg.mxu0
        %v807 = vtanh.pop %v805
        %809 = vrot.lane.b32.xlu0 %v807, 112
        %v810 = vpop.permute.xlu0 %809
        %v811 = vsel %vm438, %v807, 0
        %v813 = vsel %vm438, %v810, 0
        %815 = vmatpush.xpose.msra.mxu0 0.0
        %816 = vmatpush.xpose.msra.mxu0 0.0
        %817 = vmatpush.xpose.msra.mxu0 0.0
        %818 = vmatpush.xpose.msra.mxu0 0.0
        %819 = vmatpush.xpose.msra.mxu0 0.0
        %820 = vmatpush.xpose.msra.mxu0 0.0
        %821 = vmatpush.xpose.msra.mxu0 0.0
        %822 = vmatpush.xpose.msra.mxu0 0.0
        %823 = vmatpush.xpose.msra.mxu0 0.0
        %824 = vmatpush.xpose.msra.mxu0 0.0
        %825 = vmatpush.xpose.msra.mxu0 0.0
        %826 = vmatpush.xpose.msra.mxu0 0.0
        %827 = vmatpush.xpose.msra.mxu0 0.0
        %828 = vmatpush.xpose.msra.mxu0 0.0
        %829 = vmatpush.xpose.msra.mxu0 0.0
        %830 = vmatpush.xpose.msra.mxu0 %v813
        %831 = vmatmul.f32.gmra.mxu0 %v811
        %v832 = vpop.f32.mrf.mxu0
        %v833 = vadd.f32 0.0, %v832
        %834 = vdwg.mxu0
        %v835 = vmax.f32 %v833, 0.0
        %v836 = vsel %vm561, %v835, -inf
        %837 = vmax.xlane.f32.xlu0 %v836
        %v838 = vpop.xlane.xlu0 %837
        %v839 = vsub.f32 %v835, %v838
        %v840 = vmul.f32 %v839, 1.442695
        %v841 = vpow.pop %v840
        %v842 = vsel %vm561, %v841, 0.0
        %843 = vadd.xlane.f32.xlu0 %v842
        %v844 = vpop.xlane.xlu0 %843
        %v845 = vrcp.pop %v844
        %v846 = vmul.f32 %v844, %v845
        %v847 = vsub.f32 1.0, %v846
        %v848 = vmul.f32 %v845, %v847
        %v849 = vadd.f32 %v845, %v848
        %vm850 = vweird.f32 %v844
        %vm851 = vweird.f32 %v845
        %vm852 = vmor %vm850, %vm851
        %v853 = vsel %vm852, %v845, %v849
        %v854 = vand.u32 2147483647, %v844
        %vm855 = vcmp.eq.f32.partialorder %v854, 8.507059e+37
        %v856 = vand.u32 %v844, 2147483648
        %v857 = vor.u32 1.1754944e-38, %v856
        %v858 = vsel %vm855, %v857, %v853
        %v859 = vmul.f32 %v841, %v858
        %860 = vmatpush.msra.mxu0 0.0
        %861 = vmatpush.msra.mxu0 0.0
        %862 = vmatpush.msra.mxu0 0.0
        %863 = vmatpush.msra.mxu0 0.0
        %864 = vmatpush.msra.mxu0 0.0
        %865 = vmatpush.msra.mxu0 0.0
        %866 = vmatpush.msra.mxu0 0.0
        %867 = vmatpush.msra.mxu0 0.0
        %868 = vmatpush.msra.mxu0 0.0
        %869 = vmatpush.msra.mxu0 0.0
        %870 = vmatpush.msra.mxu0 0.0
        %871 = vmatpush.msra.mxu0 0.0
        %872 = vmatpush.msra.mxu0 0.0
        %873 = vmatpush.msra.mxu0 0.0
        %874 = vmatpush.msra.mxu0 %v380
        %875 = vmatpush.msra.mxu0 %v379
        %876 = vmatmul.f32.gmra.mxu0 %v785
        %v877 = vpop.f32.mrf.mxu0
        %v878 = vadd.f32 %v436, %v877
        %879 = vdwg.mxu0
        %v880 = vadd.f32 %v432, %v878
        %v881 = vxor.u32 %v880, 2147483648
        %v882 = vmul.f32 %v881, 1.442695
        %v883 = vpow.pop %v882
        %v884 = vadd.f32 %v883, 1.0
        %v885 = vrcp.pop %v884
        %v886 = vmul.f32 %v884, %v885
        %v887 = vsub.f32 1.0, %v886
        %v888 = vmul.f32 %v885, %v887
        %v889 = vadd.f32 %v885, %v888
        %vm890 = vweird.f32 %v884
        %vm891 = vweird.f32 %v885
        %vm892 = vmor %vm890, %vm891
        %v893 = vsel %vm892, %v885, %v889
        %v894 = vand.u32 2147483647, %v884
        %vm895 = vcmp.eq.f32.partialorder %v894, 8.507059e+37
        %v896 = vand.u32 %v884, 2147483648
        %v897 = vor.u32 1.1754944e-38, %v896
        %v898 = vsel %vm895, %v897, %v893
        %v899 = vmul.f32 1.0, %v898
        %901 = vrot.lane.b32.xlu0 %v878, 96
        %v902 = vpop.permute.xlu0 %901
        %v904 = vmul.f32 %v899, %v902
        %906 = vrot.lane.b32.xlu0 %v904, 32
        %v907 = vpop.permute.xlu0 %906
        %v909 = vadd.f32 %v432, %v907
        %v910 = vtanh.pop %v909
        %v911 = vsub.f32 1.0, %v899
        %913 = vrot.lane.b32.xlu0 %v910, 112
        %v914 = vpop.permute.xlu0 %913
        %v916 = vmul.f32 %v911, %v914
        %v917 = vmul.f32 %v899, %v781
        %v918 = vadd.f32 %v916, %v917
        %920 = vrot.lane.b32.xlu0 %v918, 112
        %v921 = vpop.permute.xlu0 %920
        %v922 = vsel %vm438, %v921, 0
        %924 = vmatpush.msra.mxu0 0.0
        %925 = vmatpush.msra.mxu0 0.0
        %926 = vmatpush.msra.mxu0 0.0
        %927 = vmatpush.msra.mxu0 0.0
        %928 = vmatpush.msra.mxu0 0.0
        %929 = vmatpush.msra.mxu0 0.0
        %930 = vmatpush.msra.mxu0 0.0
        %931 = vmatpush.msra.mxu0 0.0
        %932 = vmatpush.msra.mxu0 0.0
        %933 = vmatpush.msra.mxu0 0.0
        %934 = vmatpush.msra.mxu0 0.0
        %935 = vmatpush.msra.mxu0 0.0
        %936 = vmatpush.msra.mxu0 0.0
        %937 = vmatpush.msra.mxu0 0.0
        %938 = vmatpush.msra.mxu0 %v383
        %939 = vmatpush.msra.mxu0 %v382
        %940 = vmatmul.f32.gmra.mxu0 %v922
        %v941 = vpop.f32.mrf.mxu0
        %v942 = vadd.f32 %v505, %v941
        %943 = vdwg.mxu0
        %v944 = vtanh.pop %v942
        %946 = vrot.lane.b32.xlu0 %v944, 112
        %v947 = vpop.permute.xlu0 %946
        %v948 = vsel %vm438, %v944, 0
        %v950 = vsel %vm438, %v947, 0
        %952 = vmatpush.xpose.msra.mxu0 0.0
        %953 = vmatpush.xpose.msra.mxu0 0.0
        %954 = vmatpush.xpose.msra.mxu0 0.0
        %955 = vmatpush.xpose.msra.mxu0 0.0
        %956 = vmatpush.xpose.msra.mxu0 0.0
        %957 = vmatpush.xpose.msra.mxu0 0.0
        %958 = vmatpush.xpose.msra.mxu0 0.0
        %959 = vmatpush.xpose.msra.mxu0 0.0
        %960 = vmatpush.xpose.msra.mxu0 0.0
        %961 = vmatpush.xpose.msra.mxu0 0.0
        %962 = vmatpush.xpose.msra.mxu0 0.0
        %963 = vmatpush.xpose.msra.mxu0 0.0
        %964 = vmatpush.xpose.msra.mxu0 0.0
        %965 = vmatpush.xpose.msra.mxu0 0.0
        %966 = vmatpush.xpose.msra.mxu0 0.0
        %967 = vmatpush.xpose.msra.mxu0 %v950
        %968 = vmatmul.f32.gmra.mxu0 %v948
        %v969 = vpop.f32.mrf.mxu0
        %v970 = vadd.f32 0.0, %v969
        %971 = vdwg.mxu0
        %v972 = vmax.f32 %v970, 0.0
        %v973 = vsel %vm561, %v972, -inf
        %974 = vmax.xlane.f32.xlu0 %v973
        %v975 = vpop.xlane.xlu0 %974
        %v976 = vsub.f32 %v972, %v975
        %v977 = vmul.f32 %v976, 1.442695
        %v978 = vpow.pop %v977
        %v979 = vsel %vm561, %v978, 0.0
        %980 = vadd.xlane.f32.xlu0 %v979
        %v981 = vpop.xlane.xlu0 %980
        %v982 = vrcp.pop %v981
        %v983 = vmul.f32 %v981, %v982
        %v984 = vsub.f32 1.0, %v983
        %v985 = vmul.f32 %v982, %v984
        %v986 = vadd.f32 %v982, %v985
        %vm987 = vweird.f32 %v981
        %vm988 = vweird.f32 %v982
        %vm989 = vmor %vm987, %vm988
        %v990 = vsel %vm989, %v982, %v986
        %v991 = vand.u32 2147483647, %v981
        %vm992 = vcmp.eq.f32.partialorder %v991, 8.507059e+37
        %v993 = vand.u32 %v981, 2147483648
        %v994 = vor.u32 1.1754944e-38, %v993
        %v995 = vsel %vm992, %v994, %v990
        %v996 = vmul.f32 %v978, %v995
        %v997 = vld [vmem:[#allocation2] sm:$0xff]
        %v998 = vld [vmem:[#allocation2 + $0x8] sm:$0xff]
        %v999 = vld [vmem:[#allocation2 + $0x10] sm:$0xff]
        %v1000 = vld [vmem:[#allocation2 + $0x18] sm:$0xff]
        %v1001 = vld [vmem:[#allocation2 + $0x20] sm:$0xff]
        %v1002 = vld [vmem:[#allocation2 + $0x28] sm:$0xff]
        %v1003 = vld [vmem:[#allocation2 + $0x30] sm:$0xff]
        %v1004 = vld [vmem:[#allocation2 + $0x38] sm:$0xff]
        %v1005 = vld [vmem:[#allocation2 + $0x40] sm:$0xff]
        %v1006 = vld [vmem:[#allocation2 + $0x48] sm:$0xff]
        %v1007 = vld [vmem:[#allocation2 + $0x50] sm:$0xff]
        %v1008 = vld [vmem:[#allocation2 + $0x58] sm:$0xff]
        %v1009 = vld [vmem:[#allocation2 + $0x60] sm:$0xff]
        %v1010 = vld [vmem:[#allocation2 + $0x68] sm:$0xff]
        %v1011 = vld [vmem:[#allocation2 + $0x70] sm:$0xff]
        %v1012 = vld [vmem:[#allocation2 + $0x78] sm:$0xff]
        %v1013 = vmul.f32 %v375, 0.05
        %v1015 = vsel %vm561, %v585, 0
        %1017 = vmatpush.msra.mxu0 0.0
        %1018 = vmatpush.msra.mxu0 0.0
        %1019 = vmatpush.msra.mxu0 0.0
        %1020 = vmatpush.msra.mxu0 0.0
        %1021 = vmatpush.msra.mxu0 0.0
        %1022 = vmatpush.msra.mxu0 0.0
        %1023 = vmatpush.msra.mxu0 0.0
        %1024 = vmatpush.msra.mxu0 0.0
        %1025 = vmatpush.msra.mxu0 0.0
        %1026 = vmatpush.msra.mxu0 0.0
        %1027 = vmatpush.msra.mxu0 0.0
        %1028 = vmatpush.msra.mxu0 0.0
        %1029 = vmatpush.msra.mxu0 0.0
        %1030 = vmatpush.msra.mxu0 0.0
        %1031 = vmatpush.msra.mxu0 0.0
        %1032 = vmatpush.msra.mxu0 %v375
        %1033 = vmatmul.f32.gmra.mxu0 %v1015
        %v1034 = vpop.f32.mrf.mxu0
        %v1035 = vadd.f32 0.0, %v1034
        %1036 = vdwg.mxu0
        %v1037 = vmul.f32 %v1035, 0.95
        %v1038 = vadd.f32 %v1013, %v1037
        %v1039 = vmul.f32 %v376, 0.05
        %v1041 = vsel %vm561, %v722, 0
        %1043 = vmatpush.msra.mxu0 0.0
        %1044 = vmatpush.msra.mxu0 0.0
        %1045 = vmatpush.msra.mxu0 0.0
        %1046 = vmatpush.msra.mxu0 0.0
        %1047 = vmatpush.msra.mxu0 0.0
        %1048 = vmatpush.msra.mxu0 0.0
        %1049 = vmatpush.msra.mxu0 0.0
        %1050 = vmatpush.msra.mxu0 0.0
        %1051 = vmatpush.msra.mxu0 0.0
        %1052 = vmatpush.msra.mxu0 0.0
        %1053 = vmatpush.msra.mxu0 0.0
        %1054 = vmatpush.msra.mxu0 0.0
        %1055 = vmatpush.msra.mxu0 0.0
        %1056 = vmatpush.msra.mxu0 0.0
        %1057 = vmatpush.msra.mxu0 0.0
        %1058 = vmatpush.msra.mxu0 %v376
        %1059 = vmatmul.f32.gmra.mxu0 %v1041
        %v1060 = vpop.f32.mrf.mxu0
        %v1061 = vadd.f32 0.0, %v1060
        %1062 = vdwg.mxu0
        %v1063 = vmul.f32 %v1061, 0.95
        %v1064 = vadd.f32 %v1039, %v1063
        %v1065 = vmul.f32 %v377, 0.05
        %v1067 = vsel %vm561, %v859, 0
        %1069 = vmatpush.msra.mxu0 0.0
        %1070 = vmatpush.msra.mxu0 0.0
        %1071 = vmatpush.msra.mxu0 0.0
        %1072 = vmatpush.msra.mxu0 0.0
        %1073 = vmatpush.msra.mxu0 0.0
        %1074 = vmatpush.msra.mxu0 0.0
        %1075 = vmatpush.msra.mxu0 0.0
        %1076 = vmatpush.msra.mxu0 0.0
        %1077 = vmatpush.msra.mxu0 0.0
        %1078 = vmatpush.msra.mxu0 0.0
        %1079 = vmatpush.msra.mxu0 0.0
        %1080 = vmatpush.msra.mxu0 0.0
        %1081 = vmatpush.msra.mxu0 0.0
        %1082 = vmatpush.msra.mxu0 0.0
        %1083 = vmatpush.msra.mxu0 0.0
        %1084 = vmatpush.msra.mxu0 %v377
        %1085 = vmatmul.f32.gmra.mxu0 %v1067
        %v1086 = vpop.f32.mrf.mxu0
        %v1087 = vadd.f32 0.0, %v1086
        %1088 = vdwg.mxu0
        %v1089 = vmul.f32 %v1087, 0.95
        %v1090 = vadd.f32 %v1065, %v1089
        %v1091 = vmul.f32 %v378, 0.05
        %v1093 = vsel %vm561, %v996, 0
        %1095 = vmatpush.msra.mxu0 0.0
        %1096 = vmatpush.msra.mxu0 0.0
        %1097 = vmatpush.msra.mxu0 0.0
        %1098 = vmatpush.msra.mxu0 0.0
        %1099 = vmatpush.msra.mxu0 0.0
        %1100 = vmatpush.msra.mxu0 0.0
        %1101 = vmatpush.msra.mxu0 0.0
        %1102 = vmatpush.msra.mxu0 0.0
        %1103 = vmatpush.msra.mxu0 0.0
        %1104 = vmatpush.msra.mxu0 0.0
        %1105 = vmatpush.msra.mxu0 0.0
        %1106 = vmatpush.msra.mxu0 0.0
        %1107 = vmatpush.msra.mxu0 0.0
        %1108 = vmatpush.msra.mxu0 0.0
        %1109 = vmatpush.msra.mxu0 0.0
        %1110 = vmatpush.msra.mxu0 %v378
        %1111 = vmatmul.f32.gmra.mxu0 %v1093
        %v1112 = vpop.f32.mrf.mxu0
        %v1113 = vadd.f32 0.0, %v1112
        %1114 = vdwg.mxu0
        %v1115 = vmul.f32 %v1113, 0.95
        %v1116 = vadd.f32 %v1091, %v1115
        %s1117 = scalar_lea.vmem [#allocation2], 128
        %v1118 = vld [vmem:[%s1117] sm:$0xff]
        %v1119 = vld [vmem:[%s1117 + $0x8] sm:$0xff]
        %v1120 = vld [vmem:[%s1117 + $0x10] sm:$0xff]
        %v1121 = vld [vmem:[%s1117 + $0x18] sm:$0xff]
        %v1122 = vld [vmem:[%s1117 + $0x20] sm:$0xff]
        %v1123 = vld [vmem:[%s1117 + $0x28] sm:$0xff]
        %v1124 = vld [vmem:[%s1117 + $0x30] sm:$0xff]
        %v1125 = vld [vmem:[%s1117 + $0x38] sm:$0xff]
        %v1126 = vld [vmem:[%s1117 + $0x40] sm:$0xff]
        %v1127 = vld [vmem:[%s1117 + $0x48] sm:$0xff]
        %v1128 = vld [vmem:[%s1117 + $0x50] sm:$0xff]
        %v1129 = vld [vmem:[%s1117 + $0x58] sm:$0xff]
        %v1130 = vld [vmem:[%s1117 + $0x60] sm:$0xff]
        %v1131 = vld [vmem:[%s1117 + $0x68] sm:$0xff]
        %v1132 = vld [vmem:[%s1117 + $0x70] sm:$0xff]
        %v1133 = vld [vmem:[%s1117 + $0x78] sm:$0xff]
        %1134 = vmatpush.msra.mxu0 %v1133
        %1135 = vmatpush.msra.mxu0 %v1132
        %1136 = vmatpush.msra.mxu0 %v1131
        %1137 = vmatpush.msra.mxu0 %v1130
        %1138 = vmatpush.msra.mxu0 %v1129
        %1139 = vmatpush.msra.mxu0 %v1128
        %1140 = vmatpush.msra.mxu0 %v1127
        %1141 = vmatpush.msra.mxu0 %v1126
        %1142 = vmatpush.msra.mxu0 %v1125
        %1143 = vmatpush.msra.mxu0 %v1124
        %1144 = vmatpush.msra.mxu0 %v1123
        %1145 = vmatpush.msra.mxu0 %v1122
        %1146 = vmatpush.msra.mxu0 %v1121
        %1147 = vmatpush.msra.mxu0 %v1120
        %1148 = vmatpush.msra.mxu0 %v1119
        %1149 = vmatpush.msra.mxu0 %v1118
        %1150 = vmatmul.f32.gmra.mxu0 %v1038
        %v1151 = vpop.f32.mrf.mxu0
        %v1152 = vadd.f32 0.0, %v1151
        %1153 = vmatmul.f32.gmra.mxu0 %v1064
        %v1154 = vpop.f32.mrf.mxu0
        %v1155 = vadd.f32 0.0, %v1154
        %1156 = vmatmul.f32.gmra.mxu0 %v1090
        %v1157 = vpop.f32.mrf.mxu0
        %v1158 = vadd.f32 0.0, %v1157
        %1159 = vmatmul.f32.gmra.mxu0 %v1116
        %v1160 = vpop.f32.mrf.mxu0
        %v1161 = vadd.f32 0.0, %v1160
        %1162 = vdwg.mxu0
        %1163 = vmatpush.msra.mxu0 %v1012
        %1164 = vmatpush.msra.mxu0 %v1011
        %1165 = vmatpush.msra.mxu0 %v1010
        %1166 = vmatpush.msra.mxu0 %v1009
        %1167 = vmatpush.msra.mxu0 %v1008
        %1168 = vmatpush.msra.mxu0 %v1007
        %1169 = vmatpush.msra.mxu0 %v1006
        %1170 = vmatpush.msra.mxu0 %v1005
        %1171 = vmatpush.msra.mxu0 %v1004
        %1172 = vmatpush.msra.mxu0 %v1003
        %1173 = vmatpush.msra.mxu0 %v1002
        %1174 = vmatpush.msra.mxu0 %v1001
        %1175 = vmatpush.msra.mxu0 %v1000
        %1176 = vmatpush.msra.mxu0 %v999
        %1177 = vmatpush.msra.mxu0 %v998
        %1178 = vmatpush.msra.mxu0 %v997
        %1179 = vmatmul.f32.gmra.mxu0 %v375
        %v1180 = vpop.f32.mrf.mxu0
        %v1181 = vadd.f32 %v1152, %v1180
        %1182 = vmatmul.f32.gmra.mxu0 %v376
        %v1183 = vpop.f32.mrf.mxu0
        %v1184 = vadd.f32 %v1155, %v1183
        %1185 = vmatmul.f32.gmra.mxu0 %v377
        %v1186 = vpop.f32.mrf.mxu0
        %v1187 = vadd.f32 %v1158, %v1186
        %1188 = vmatmul.f32.gmra.mxu0 %v378
        %v1189 = vpop.f32.mrf.mxu0
        %v1190 = vadd.f32 %v1161, %v1189
        %1191 = vdwg.mxu0
        %1192 = vmatpush.msra.mxu0 0.0
        %1193 = vmatpush.msra.mxu0 0.0
        %1194 = vmatpush.msra.mxu0 0.0
        %1195 = vmatpush.msra.mxu0 0.0
        %1196 = vmatpush.msra.mxu0 0.0
        %1197 = vmatpush.msra.mxu0 0.0
        %1198 = vmatpush.msra.mxu0 0.0
        %1199 = vmatpush.msra.mxu0 0.0
        %1200 = vmatpush.msra.mxu0 0.0
        %1201 = vmatpush.msra.mxu0 0.0
        %1202 = vmatpush.msra.mxu0 0.0
        %1203 = vmatpush.msra.mxu0 0.0
        %1204 = vmatpush.msra.mxu0 0.0
        %1205 = vmatpush.msra.mxu0 0.0
        %1206 = vmatpush.msra.mxu0 0.0
        %1207 = vmatpush.msra.mxu0 %v1038
        %1208 = vmatmul.f32.gmra.mxu0 %v1015
        %v1209 = vpop.f32.mrf.mxu0
        %v1210 = vadd.f32 0.0, %v1209
        %1211 = vdwg.mxu0
        %v1212 = vmul.f32 %v1210, 0.95
        %v1213 = vadd.f32 %v1013, %v1212
        %1214 = vmatpush.msra.mxu0 0.0
        %1215 = vmatpush.msra.mxu0 0.0
        %1216 = vmatpush.msra.mxu0 0.0
        %1217 = vmatpush.msra.mxu0 0.0
        %1218 = vmatpush.msra.mxu0 0.0
        %1219 = vmatpush.msra.mxu0 0.0
        %1220 = vmatpush.msra.mxu0 0.0
        %1221 = vmatpush.msra.mxu0 0.0
        %1222 = vmatpush.msra.mxu0 0.0
        %1223 = vmatpush.msra.mxu0 0.0
        %1224 = vmatpush.msra.mxu0 0.0
        %1225 = vmatpush.msra.mxu0 0.0
        %1226 = vmatpush.msra.mxu0 0.0
        %1227 = vmatpush.msra.mxu0 0.0
        %1228 = vmatpush.msra.mxu0 0.0
        %1229 = vmatpush.msra.mxu0 %v1064
        %1230 = vmatmul.f32.gmra.mxu0 %v1041
        %v1231 = vpop.f32.mrf.mxu0
        %v1232 = vadd.f32 0.0, %v1231
        %1233 = vdwg.mxu0
        %v1234 = vmul.f32 %v1232, 0.95
        %v1235 = vadd.f32 %v1039, %v1234
        %1236 = vmatpush.msra.mxu0 0.0
        %1237 = vmatpush.msra.mxu0 0.0
        %1238 = vmatpush.msra.mxu0 0.0
        %1239 = vmatpush.msra.mxu0 0.0
        %1240 = vmatpush.msra.mxu0 0.0
        %1241 = vmatpush.msra.mxu0 0.0
        %1242 = vmatpush.msra.mxu0 0.0
        %1243 = vmatpush.msra.mxu0 0.0
        %1244 = vmatpush.msra.mxu0 0.0
        %1245 = vmatpush.msra.mxu0 0.0
        %1246 = vmatpush.msra.mxu0 0.0
        %1247 = vmatpush.msra.mxu0 0.0
        %1248 = vmatpush.msra.mxu0 0.0
        %1249 = vmatpush.msra.mxu0 0.0
        %1250 = vmatpush.msra.mxu0 0.0
        %1251 = vmatpush.msra.mxu0 %v1090
        %1252 = vmatmul.f32.gmra.mxu0 %v1067
        %v1253 = vpop.f32.mrf.mxu0
        %v1254 = vadd.f32 0.0, %v1253
        %1255 = vdwg.mxu0
        %v1256 = vmul.f32 %v1254, 0.95
        %v1257 = vadd.f32 %v1065, %v1256
        %1258 = vmatpush.msra.mxu0 0.0
        %1259 = vmatpush.msra.mxu0 0.0
        %1260 = vmatpush.msra.mxu0 0.0
        %1261 = vmatpush.msra.mxu0 0.0
        %1262 = vmatpush.msra.mxu0 0.0
        %1263 = vmatpush.msra.mxu0 0.0
        %1264 = vmatpush.msra.mxu0 0.0
        %1265 = vmatpush.msra.mxu0 0.0
        %1266 = vmatpush.msra.mxu0 0.0
        %1267 = vmatpush.msra.mxu0 0.0
        %1268 = vmatpush.msra.mxu0 0.0
        %1269 = vmatpush.msra.mxu0 0.0
        %1270 = vmatpush.msra.mxu0 0.0
        %1271 = vmatpush.msra.mxu0 0.0
        %1272 = vmatpush.msra.mxu0 0.0
        %1273 = vmatpush.msra.mxu0 %v1116
        %1274 = vmatmul.f32.gmra.mxu0 %v1093
        %v1275 = vpop.f32.mrf.mxu0
        %v1276 = vadd.f32 0.0, %v1275
        %1277 = vdwg.mxu0
        %v1278 = vmul.f32 %v1276, 0.95
        %v1279 = vadd.f32 %v1091, %v1278
        %s1280 = scalar_lea.vmem [#allocation2], 256
        %v1281 = vld [vmem:[%s1280] sm:$0xff]
        %v1282 = vld [vmem:[%s1280 + $0x8] sm:$0xff]
        %v1283 = vld [vmem:[%s1280 + $0x10] sm:$0xff]
        %v1284 = vld [vmem:[%s1280 + $0x18] sm:$0xff]
        %v1285 = vld [vmem:[%s1280 + $0x20] sm:$0xff]
        %v1286 = vld [vmem:[%s1280 + $0x28] sm:$0xff]
        %v1287 = vld [vmem:[%s1280 + $0x30] sm:$0xff]
        %v1288 = vld [vmem:[%s1280 + $0x38] sm:$0xff]
        %v1289 = vld [vmem:[%s1280 + $0x40] sm:$0xff]
        %v1290 = vld [vmem:[%s1280 + $0x48] sm:$0xff]
        %v1291 = vld [vmem:[%s1280 + $0x50] sm:$0xff]
        %v1292 = vld [vmem:[%s1280 + $0x58] sm:$0xff]
        %v1293 = vld [vmem:[%s1280 + $0x60] sm:$0xff]
        %v1294 = vld [vmem:[%s1280 + $0x68] sm:$0xff]
        %v1295 = vld [vmem:[%s1280 + $0x70] sm:$0xff]
        %v1296 = vld [vmem:[%s1280 + $0x78] sm:$0xff]
        %1297 = vmatpush.msra.mxu0 %v1296
        %1298 = vmatpush.msra.mxu0 %v1295
        %1299 = vmatpush.msra.mxu0 %v1294
        %1300 = vmatpush.msra.mxu0 %v1293
        %1301 = vmatpush.msra.mxu0 %v1292
        %1302 = vmatpush.msra.mxu0 %v1291
        %1303 = vmatpush.msra.mxu0 %v1290
        %1304 = vmatpush.msra.mxu0 %v1289
        %1305 = vmatpush.msra.mxu0 %v1288
        %1306 = vmatpush.msra.mxu0 %v1287
        %1307 = vmatpush.msra.mxu0 %v1286
        %1308 = vmatpush.msra.mxu0 %v1285
        %1309 = vmatpush.msra.mxu0 %v1284
        %1310 = vmatpush.msra.mxu0 %v1283
        %1311 = vmatpush.msra.mxu0 %v1282
        %1312 = vmatpush.msra.mxu0 %v1281
        %1313 = vmatmul.f32.gmra.mxu0 %v1213
        %v1314 = vpop.f32.mrf.mxu0
        %v1315 = vadd.f32 0.0, %v1314
        %1316 = vmatmul.f32.gmra.mxu0 %v1235
        %v1317 = vpop.f32.mrf.mxu0
        %v1318 = vadd.f32 0.0, %v1317
        %1319 = vmatmul.f32.gmra.mxu0 %v1257
        %v1320 = vpop.f32.mrf.mxu0
        %v1321 = vadd.f32 0.0, %v1320
        %1322 = vmatmul.f32.gmra.mxu0 %v1279
        %v1323 = vpop.f32.mrf.mxu0
        %v1324 = vadd.f32 0.0, %v1323
        %1325 = vdwg.mxu0
        %v1326 = vadd.f32 %v1181, %v1315
        %v1327 = vadd.f32 %v1184, %v1318
        %v1328 = vadd.f32 %v1187, %v1321
        %v1329 = vadd.f32 %v1190, %v1324
        %v1330 = vld [vmem:[%s9] sm:$0x1]
        %v1332 = vperm.slane %v1330, 0
        %v1334 = vadd.f32 %v1326, %v1332
        %v1335 = vadd.f32 %v1327, %v1332
        %v1336 = vadd.f32 %v1328, %v1332
        %v1337 = vadd.f32 %v1329, %v1332
        %1338 = vst [vmem:[%s369] sm:$0xff] %v1334
        %1339 = vst [vmem:[%s369 + $0x8] sm:$0xff] %v1335
        %1340 = vst [vmem:[%s369 + $0x10] sm:$0xff] %v1336
        %1341 = vst [vmem:[%s369 + $0x18] sm:$0xff] %v1337
        %s1342 = sand.u32 %s248, 1
        %s1343 = scalar_lea.sflag [#allocation4], %s1342
        %s1344 = sand.u32 %s248, 1
        %s1345 = smul.addr %s1344, 32
        %s1346 = scalar_lea.vmem [#allocation5], %s1345
        // Predicated region
        $region65: #{tpu_custom_call.1} parent=59 // pred_check
          %p1347 = pneg %p258
        $region66: #{tpu_custom_call.1} parent=59 // pred_check_branch
          %1349 = sbr.rel (%p1347) target = $region68
        $region67: #{tpu_custom_call.1} parent=59 // pred_region
          %1351 = vsyncadd %s1343, 0
          %s1352 = smul.addr %s25, 4
          %s1353 = smul.addr %s1352, 8
          %s1354 = scalar_lea.hbm %s10, %s1353
          %s1355 = sshll.u32 %s1346, 4
          %s1356 = int_to_ptr.vmem [resolvable:$true] %s1355
          %s1357 = sshll.u32 %s1354, 4
          %s1358 = int_to_ptr.hbm [resolvable:$true] %s1357
          %1363 = dma.vmem_to_hbm [thread:$0]  %s1356, 512, %s1358, %s1343, 128, 128, 8
        $region68: #{tpu_custom_call.1} parent=59 // pred_fallthru
          _
      $region60: #{tpu_custom_call.1} parent=5 // pred_fallthru
        _
      %p1364 = scmp.le.s32.totalorder 2, %s20
      // Predicated region
      $region69: #{tpu_custom_call.1} parent=5 // pred_check
        %p1365 = pneg %p1364
      $region70: #{tpu_custom_call.1} parent=5 // pred_check_branch
        %1367 = sbr.rel (%p1365) target = $region72
      $region71: #{tpu_custom_call.1} parent=5 // pred_region
        %s1368 = ssub.s32 %s20, 2
        // Predicated region
        $region73: #{tpu_custom_call.1} parent=71 // pred_check
          %p1369 = pneg %p264
        $region74: #{tpu_custom_call.1} parent=71 // pred_check_branch
          %1371 = sbr.rel (%p1369) target = $region76
        $region75: #{tpu_custom_call.1} parent=71 // pred_region
          %s1372 = sand.u32 %s249, 1
          %s1373 = scalar_lea.sflag [#allocation4], %s1372
          %s1374 = sand.u32 %s249, 1
          %s1375 = smul.addr %s1374, 32
          %s1376 = scalar_lea.vmem [#allocation5], %s1375
          %1378 = dma.done %s1373, 512
        $region76: #{tpu_custom_call.1} parent=71 // pred_fallthru
          _
      $region72: #{tpu_custom_call.1} parent=5 // pred_fallthru
        _
    $region6: #{tpu_custom_call.1} parent=1 // loop_footer
      %s24 = sadd.s32 1, %s20
    $region7: #{tpu_custom_call.1} parent=1 // loop_footer_branch
      %19 = sbr.rel target = $region3
    $region8: #{tpu_custom_call.1} parent=1 // loop_exit
      _
    %1379 = vsyncpa [#allocation3], 1
    %s1380 = scalar_lea.sflag [#allocation3], 1
    %1381 = vsyncpa %s1380, 1
    %1382 = vsyncpa [#allocation4], 1
    %s1383 = scalar_lea.sflag [#allocation4], 1
    %1384 = vsyncpa %s1383, 1

</llo_original>
